<compile_context>
chip_gen: v7x
topology: tpu7x:2x2x1
jax: 0.10.0
libtpu: 0.0.40
codegen_flags: <defaults>
</compile_context>

<pallas_src>
import math

import jax
import jax.numpy as jnp
from jax import lax
from jax.experimental import pallas as pl
from jax.experimental.pallas import tpu as pltpu

# ----------------------------- configuration -------------------------------
DIM = 128          # d_model         (module default 1024, scaled down)
NHEAD = 8          # nhead           (module default)
DFF = 256          # dim_feedforward (module uses 2*d_model; keep the ratio)
N = 2              # batch
T = 8              # sequence length (num frames)

LN_EPS = 1e-5
BN_EPS = 1e-5

# Rows of the packed per-channel vector table (all width = DIM).
(_BN_SCALE, _BN_SHIFT, _OUT_B, _LN1_W, _LN1_B, _FF2_B, _LN2_W, _LN2_B) = range(8)


# ------------------------------- kernel ------------------------------------
def make_kernel(nhead: int):
    def kernel(x_ref, bias_ref, pool_ref, hmask_ref, vecs_ref, inb_ref, ff1b_ref,
               in_w_ref, out_w_ref, ff1_w_ref, ff2_w_ref, emb_ref):
        n, t, c = x_ref.shape
        nt = n * t
        ht = nhead * t

        # Whole batch as one lane/sublane-dense (N*T, C) slab.
        x2 = x_ref[...].reshape(nt, c)
        attn_bias = bias_ref[...]        # (N, H*T) additive key-padding bias
        pool_w = pool_ref[...]           # (N, T)   frame_mask / num_frames
        hmask = hmask_ref[...]           # (H*T, C) head-indicator (static 0/1)

        vecs = vecs_ref[...]             # (8, C) packed per-channel vectors
        bn_scale = vecs[_BN_SCALE:_BN_SCALE + 1]
        bn_shift = vecs[_BN_SHIFT:_BN_SHIFT + 1]
        out_b = vecs[_OUT_B:_OUT_B + 1]
        ln1_w = vecs[_LN1_W:_LN1_W + 1]
        ln1_b = vecs[_LN1_B:_LN1_B + 1]
        ff2_b = vecs[_FF2_B:_FF2_B + 1]
        ln2_w = vecs[_LN2_W:_LN2_W + 1]
        ln2_b = vecs[_LN2_B:_LN2_B + 1]

        # ---- BatchNorm1d (eval mode) folded to a single scale/shift ----
        xb = x2 * bn_scale + bn_shift

        def bdot(a, w_ref):
            # bf16 MXU matmul with f32 accumulation (weights stored in bf16).
            return jnp.dot(a.astype(jnp.bfloat16), w_ref[...],
                           preferred_element_type=jnp.float32)

        # ---- QKV projection (1/sqrt(hd) already folded into the Q columns) ----
        qkv = bdot(xb, in_w_ref) + inb_ref[...]              # (N*T, 3C)
        q3 = qkv[:, :c].reshape(n, t, c)                     # 128-lane slices only
        k3 = qkv[:, c:2 * c].reshape(n, t, c)
        v3 = qkv[:, 2 * c:].reshape(n, t, c)

        # ---- lane-dense multi-head attention ----
        # Row j = h*T + k of khat/vhat holds key/value position k with every
        # channel outside head h zeroed.  Built with a full-tile broadcast +
        # leading-dim reshape + one VPU multiply (no sub-128-lane slicing).
        def head_tile(a):
            rep = jnp.broadcast_to(a[:, None], (n, nhead, t, c)).reshape(n, ht, c)
            return rep * hmask[None]

        khat = head_tile(k3)                                 # (N, H*T, C)
        vhat = head_tile(v3)

        # Per-head scores: the C contraction only picks up head(j)'s channels.
        # TODO(synk): at production T / d_model cast these einsum operands to
        # bf16 (keep preferred_element_type=f32) for v6e/v7x MXU throughput.
        s = jnp.einsum("nqc,njc->nqj", q3, khat,
                       preferred_element_type=jnp.float32)   # (N, T, H*T)
        # PyTorch adds a *float* src_key_padding_mask directly to the logits
        # (broadcast over heads and query positions) -- reproduce that exactly.
        # TODO(synk): if bool-mask semantics (True=pad -> -inf) are intended,
        # replace the add with a large negative fill on padded keys.
        s = s + attn_bias[:, None, :]
        # Row-global max is a valid stabilizer: each head's softmax is shift
        # invariant, and logits here are O(1) so no per-head underflow.
        s = s - jnp.max(s, axis=-1, keepdims=True)
        e = jnp.exp(s)                                       # (N, T, H*T)

        # Per-channel softmax denominator: den[nq, c] = sum_{j in head(c)} e[nq, j]
        den = jnp.dot(e.reshape(nt, ht), hmask,
                      preferred_element_type=jnp.float32)    # (N*T, C)
        # Unnormalized concat-heads output: vhat is head-masked, so channel c
        # only receives contributions from its own head's keys.
        u = jnp.einsum("nqj,njc->nqc", e, vhat,
                       preferred_element_type=jnp.float32)   # (N, T, C)
        attn_c = u.reshape(nt, c) / den                      # exact softmax divide

        # ---- output projection on the concatenated heads ----
        attn = bdot(attn_c, out_w_ref) + out_b

        # ---- residual + LayerNorm1 (dropout == identity in eval mode) ----
        y = xb + attn
        mu = jnp.mean(y, axis=-1, keepdims=True)
        var = jnp.mean((y - mu) ** 2, axis=-1, keepdims=True)
        y = (y - mu) * lax.rsqrt(var + LN_EPS) * ln1_w + ln1_b

        # ---- feed-forward (ReLU) + residual + LayerNorm2 ----
        h1 = jnp.maximum(bdot(y, ff1_w_ref) + ff1b_ref[...], 0.0)
        h2 = bdot(h1, ff2_w_ref) + ff2_b
        z = y + h2
        mu2 = jnp.mean(z, axis=-1, keepdims=True)
        var2 = jnp.mean((z - mu2) ** 2, axis=-1, keepdims=True)
        z = (z - mu2) * lax.rsqrt(var2 + LN_EPS) * ln2_w + ln2_b

        # ---- masked mean pool (1/num_frames folded into pool_w) + L2 norm ----
        pooled = jnp.sum(z.reshape(n, t, c) * pool_w[:, :, None], axis=1)   # (N, C)
        nrm2 = jnp.sum(pooled * pooled, axis=-1, keepdims=True)
        emb_ref[...] = pooled * lax.rsqrt(jnp.maximum(nrm2, 1e-24))

    return kernel


# ------------------------- parameter preparation ----------------------------
def pack_params(params, nhead=NHEAD):
    """One-time prep: fold BatchNorm into scale/shift, fold the 1/sqrt(hd) query
    scale into the Q block of the in-projection, pack the small per-channel
    vectors into one (8, C) table, and store the matmul weights in bf16."""
    dim = params["in_w"].shape[0]
    hd = dim // nhead
    scale = 1.0 / math.sqrt(hd)

    bn_scale = params["bn_gamma"] * lax.rsqrt(params["bn_var"] + BN_EPS)
    bn_shift = params["bn_beta"] - params["bn_mean"] * bn_scale
    vecs = jnp.concatenate(
        [bn_scale, bn_shift, params["out_b"], params["ln1_w"], params["ln1_b"],
         params["ff2_b"], params["ln2_w"], params["ln2_b"]], axis=0
    ).astype(jnp.float32)                                     # (8, DIM)

    # Fold the query scale into W_q / b_q (columns [0:dim] of the in-projection).
    qscale = jnp.concatenate(
        [jnp.full((1, dim), scale, jnp.float32), jnp.ones((1, 2 * dim), jnp.float32)],
        axis=1)                                               # (1, 3*DIM)
    return {
        "vecs": vecs,
        "in_b": (params["in_b"] * qscale).astype(jnp.float32),   # (1, 3*DIM)
        "ff1_b": params["ff1_b"].astype(jnp.float32),            # (1, DFF)
        # TODO(synk): at production dims (d_model=1024, dff=2048) single-buffer
        # the weight BlockSpecs (pipeline_mode=pl.Buffered(1) is useless to
        # double-buffer on a 1-step grid), raise vmem_limit_bytes, and K-tile
        # ff1_w/ff2_w so everything fits v7x's 64 MiB VMEM.
        "in_w": (params["in_w"] * qscale).astype(jnp.bfloat16),  # (DIM, 3*DIM)
        "out_w": params["out_w"].astype(jnp.bfloat16),           # (DIM, DIM)
        "ff1_w": params["ff1_w"].astype(jnp.bfloat16),           # (DIM, DFF)
        "ff2_w": params["ff2_w"].astype(jnp.bfloat16),           # (DFF, DIM)
    }


# ------------------------------- wrapper ------------------------------------
def transformer_forward(x, num_frames, packed, nhead=NHEAD):
    n, t, c = x.shape
    hd = c // nhead
    nf = num_frames.astype(jnp.float32)
    # frame_mask[n, t] = 1.0 if t < num_frames[n] else 0.0 (matches PyTorch code)
    frame_mask = (jnp.arange(t, dtype=jnp.float32)[None, :] < nf[:, None]
                  ).astype(jnp.float32)                        # (N, T)
    # Additive float key-padding bias laid out per attention lane j = h*T + k.
    attn_bias = jnp.tile(frame_mask, (1, nhead))               # (N, H*T)
    # Fold the 1/num_frames mean division into the pooling weights.
    pool_w = frame_mask / nf[:, None]                          # (N, T)
    # Static head-indicator: hmask[h*T + k, ch] = 1 iff channel ch is in head h.
    hmask = (jnp.arange(nhead * t)[:, None] // t ==
             jnp.arange(c)[None, :] // hd).astype(jnp.float32)  # (H*T, C)

    dff = packed["ff1_w"].shape[1]
    flops = int(2 * n * t * c * (3 * c)                # qkv projection
                + 3 * 2 * n * t * (nhead * t) * c      # scores + denom + pv
                + 2 * n * t * c * c                    # output projection
                + 4 * n * t * c * dff)                 # feed-forward
    transcendentals = int(n * t * nhead * t)

    # TODO(synk): at production dims feed x in bf16 (host-side cast) to halve
    # the largest input DMA; the kernel already casts before every matmul.
    args = [x, attn_bias, pool_w, hmask, packed["vecs"], packed["in_b"],
            packed["ff1_b"], packed["in_w"], packed["out_w"], packed["ff1_w"],
            packed["ff2_w"]]
    bytes_accessed = int(sum(a.size * a.dtype.itemsize for a in args) + n * c * 4)

    def full_spec(a):
        nd = a.ndim
        return pl.BlockSpec(a.shape, lambda i, _nd=nd: (0,) * _nd)

    # Whole batch in a single grid step: at these sizes per-step overhead
    # dominates, so one (N*T, C) slab feeds the MXU far better than N tiny
    # per-sequence steps.
    # TODO(synk): for large batches split N over a leading "parallel" grid axis
    # (>= 2 roughly equal steps) so v7x can shard it across its two TensorCores.
    out = pl.pallas_call(
        make_kernel(nhead),
        out_shape=jax.ShapeDtypeStruct((n, c), jnp.float32),
        grid=(1,),
        in_specs=[full_spec(a) for a in args],
        out_specs=pl.BlockSpec((n, c), lambda i: (0, 0)),
        compiler_params=pltpu.CompilerParams(dimension_semantics=("arbitrary",)),
        cost_estimate=pl.CostEstimate(flops=flops, transcendentals=transcendentals,
                                      bytes_accessed=bytes_accessed),
    )(*args)
    return out


# --------------------------- parameter init ---------------------------------
def init_params(key, dim=DIM, dff=DFF):
    ks = jax.random.split(key, 8)
    s = 0.05
    return {
        # BatchNorm1d (eval mode)
        "bn_gamma": jnp.ones((1, dim), jnp.float32),
        "bn_beta":  jnp.zeros((1, dim), jnp.float32),
        "bn_mean":  0.1 * jax.random.normal(ks[0], (1, dim), jnp.float32),
        "bn_var":   1.0 + 0.1 * jax.random.uniform(ks[1], (1, dim), jnp.float32),
        # MultiheadAttention in/out projections (stored as (in, out) = W.T)
        "in_w":  s * jax.random.normal(ks[2], (dim, 3 * dim), jnp.float32),
        "in_b":  s * jax.random.normal(ks[3], (1, 3 * dim), jnp.float32),
        "out_w": s * jax.random.normal(ks[4], (dim, dim), jnp.float32),
        "out_b": jnp.zeros((1, dim), jnp.float32),
        # LayerNorms
        "ln1_w": jnp.ones((1, dim), jnp.float32),
        "ln1_b": jnp.zeros((1, dim), jnp.float32),
        "ln2_w": jnp.ones((1, dim), jnp.float32),
        "ln2_b": jnp.zeros((1, dim), jnp.float32),
        # Feed-forward (stored as (in, out) = W.T)
        "ff1_w": s * jax.random.normal(ks[5], (dim, dff), jnp.float32),
        "ff1_b": jnp.zeros((1, dff), jnp.float32),
        "ff2_w": s * jax.random.normal(ks[6], (dff, dim), jnp.float32),
        "ff2_b": jnp.zeros((1, dim), jnp.float32),
    }


# ---------------------------- pure-JAX reference ----------------------------
def reference_forward(x, num_frames, packed, nhead=NHEAD):
    n, t, c = x.shape
    hd = c // nhead
    nf = num_frames.astype(jnp.float32)
    mask = (jnp.arange(t, dtype=jnp.float32)[None, :] < nf[:, None]).astype(jnp.float32)

    vecs = packed["vecs"]
    bn_scale, bn_shift, out_b, ln1_w, ln1_b, ff2_b, ln2_w, ln2_b = (
        vecs[i] for i in range(8))

    def bdot(a, w):
        return jnp.dot(a.astype(jnp.bfloat16), w, preferred_element_type=jnp.float32)

    xb = x * bn_scale + bn_shift                              # (N, T, C)

    qkv = (bdot(xb.reshape(n * t, c), packed["in_w"])
           + packed["in_b"][0]).reshape(n, t, 3 * c)
    q = qkv[..., :c]                      # 1/sqrt(hd) already folded into in_w/in_b
    k = qkv[..., c:2 * c]
    v = qkv[..., 2 * c:]
    qh = q.reshape(n, t, nhead, hd).transpose(0, 2, 1, 3)
    kh = k.reshape(n, t, nhead, hd).transpose(0, 2, 1, 3)
    vh = v.reshape(n, t, nhead, hd).transpose(0, 2, 1, 3)
    s = jnp.einsum("nhqd,nhkd->nhqk", qh, kh,
                   precision=lax.Precision.HIGHEST) + mask[:, None, None, :]
    p = jax.nn.softmax(s, axis=-1)
    attn = jnp.einsum("nhqk,nhkd->nhqd", p, vh,
                      precision=lax.Precision.HIGHEST
                      ).transpose(0, 2, 1, 3).reshape(n, t, c)
    attn = (bdot(attn.reshape(n * t, c), packed["out_w"]) + out_b).reshape(n, t, c)

    def ln(u, w, b):
        mu = jnp.mean(u, axis=-1, keepdims=True)
        var = jnp.mean((u - mu) ** 2, axis=-1, keepdims=True)
        return (u - mu) * lax.rsqrt(var + LN_EPS) * w + b

    y = ln(xb + attn, ln1_w, ln1_b)
    h1 = jnp.maximum(bdot(y.reshape(n * t, c), packed["ff1_w"]) + packed["ff1_b"][0],
                     0.0)
    h2 = (bdot(h1, packed["ff2_w"]) + ff2_b).reshape(n, t, c)
    z = ln(y + h2, ln2_w, ln2_b)

    pooled = jnp.sum(z * mask[..., None], axis=1) / nf[:, None]
    nrm2 = jnp.sum(pooled * pooled, axis=-1, keepdims=True)
    return pooled * lax.rsqrt(jnp.maximum(nrm2, 1e-24))


# --------------------------------- main --------------------------------------
if __name__ == "__main__":
    key = jax.random.PRNGKey(0)
    kx, kp = jax.random.split(key)

    x = jax.random.normal(kx, (N, T, DIM), jnp.float32)
    # second sequence is padded (only T-3 valid frames) to exercise the mask path
    num_frames = jnp.array([T, T - 3], dtype=jnp.int32)
    params = init_params(kp)
    packed = pack_params(params)

    emb = transformer_forward(x, num_frames, packed)
    emb = jax.block_until_ready(emb)

    ref = reference_forward(x, num_frames, packed)
    assert emb.shape == (N, DIM)
    max_err = float(jnp.max(jnp.abs(emb - ref)))
    assert jnp.allclose(emb, ref, atol=2e-3, rtol=2e-3), \
        f"Pallas kernel mismatch vs reference (max abs err {max_err})"

    print("KERNEL_OK")
</pallas_src>

<mosaic_0001>
module attributes {stable_mosaic.version = 11 : i64} {
  func.func @kernel(%arg0: i32, %arg1: memref<2x8x128xf32, #tpu.memory_space<vmem>>, %arg2: memref<2x64xf32, #tpu.memory_space<vmem>>, %arg3: memref<2x8xf32, #tpu.memory_space<vmem>>, %arg4: memref<64x128xf32, #tpu.memory_space<vmem>>, %arg5: memref<8x128xf32, #tpu.memory_space<vmem>>, %arg6: memref<1x384xf32, #tpu.memory_space<vmem>>, %arg7: memref<1x256xf32, #tpu.memory_space<vmem>>, %arg8: memref<128x384xbf16, #tpu.memory_space<vmem>>, %arg9: memref<128x128xbf16, #tpu.memory_space<vmem>>, %arg10: memref<128x256xbf16, #tpu.memory_space<vmem>>, %arg11: memref<256x128xbf16, #tpu.memory_space<vmem>>, %arg12: memref<2x128xf32, #tpu.memory_space<vmem>>) attributes {dimension_semantics = [#tpu.dimension_semantics<arbitrary>], iteration_bounds = array<i64: 1>, scalar_prefetch = 0 : i64, scratch_operands = 0 : i64, tpu.core_type = #tpu.core_type<tc>, window_params = [{pipeline_mode = #tpu.pipeline_mode<synchronous>, transform_indices = @transform_0, window_bounds = array<i64: 2, 8, 128>}, {pipeline_mode = #tpu.pipeline_mode<synchronous>, transform_indices = @transform_1, window_bounds = array<i64: 2, 64>}, {pipeline_mode = #tpu.pipeline_mode<synchronous>, transform_indices = @transform_2, window_bounds = array<i64: 2, 8>}, {pipeline_mode = #tpu.pipeline_mode<synchronous>, transform_indices = @transform_3, window_bounds = array<i64: 64, 128>}, {pipeline_mode = #tpu.pipeline_mode<synchronous>, transform_indices = @transform_4, window_bounds = array<i64: 8, 128>}, {pipeline_mode = #tpu.pipeline_mode<synchronous>, transform_indices = @transform_5, window_bounds = array<i64: 1, 384>}, {pipeline_mode = #tpu.pipeline_mode<synchronous>, transform_indices = @transform_6, window_bounds = array<i64: 1, 256>}, {pipeline_mode = #tpu.pipeline_mode<synchronous>, transform_indices = @transform_7, window_bounds = array<i64: 128, 384>}, {pipeline_mode = #tpu.pipeline_mode<synchronous>, transform_indices = @transform_8, window_bounds = array<i64: 128, 128>}, {pipeline_mode = #tpu.pipeline_mode<synchronous>, transform_indices = @transform_9, window_bounds = array<i64: 128, 256>}, {pipeline_mode = #tpu.pipeline_mode<synchronous>, transform_indices = @transform_10, window_bounds = array<i64: 256, 128>}, {pipeline_mode = #tpu.pipeline_mode<synchronous>, transform_indices = @transform_11, window_bounds = array<i64: 2, 128>}]} {
    %c0 = arith.constant 0 : index
    %c0_0 = arith.constant 0 : index
    %c0_1 = arith.constant 0 : index
    %0 = vector.load %arg1[%c0, %c0_0, %c0_1] : memref<2x8x128xf32, #tpu.memory_space<vmem>>, vector<2x8x128xf32>
    %1 = vector.shape_cast %0 : vector<2x8x128xf32> to vector<16x128xf32>
    %c0_2 = arith.constant 0 : index
    %c0_3 = arith.constant 0 : index
    %2 = vector.load %arg2[%c0_2, %c0_3] : memref<2x64xf32, #tpu.memory_space<vmem>>, vector<2x64xf32>
    %c0_4 = arith.constant 0 : index
    %c0_5 = arith.constant 0 : index
    %3 = vector.load %arg3[%c0_4, %c0_5] : memref<2x8xf32, #tpu.memory_space<vmem>>, vector<2x8xf32>
    %c0_6 = arith.constant 0 : index
    %c0_7 = arith.constant 0 : index
    %4 = vector.load %arg4[%c0_6, %c0_7] : memref<64x128xf32, #tpu.memory_space<vmem>>, vector<64x128xf32>
    %c0_8 = arith.constant 0 : index
    %c0_9 = arith.constant 0 : index
    %5 = vector.load %arg5[%c0_8, %c0_9] : memref<8x128xf32, #tpu.memory_space<vmem>>, vector<8x128xf32>
    %6 = vector.extract_strided_slice %5 {offsets = [0, 0], sizes = [1, 128], strides = [1, 1]} : vector<8x128xf32> to vector<1x128xf32>
    %7 = vector.extract_strided_slice %5 {offsets = [1, 0], sizes = [1, 128], strides = [1, 1]} : vector<8x128xf32> to vector<1x128xf32>
    %8 = vector.extract_strided_slice %5 {offsets = [2, 0], sizes = [1, 128], strides = [1, 1]} : vector<8x128xf32> to vector<1x128xf32>
    %9 = vector.extract_strided_slice %5 {offsets = [3, 0], sizes = [1, 128], strides = [1, 1]} : vector<8x128xf32> to vector<1x128xf32>
    %10 = vector.extract_strided_slice %5 {offsets = [4, 0], sizes = [1, 128], strides = [1, 1]} : vector<8x128xf32> to vector<1x128xf32>
    %11 = vector.extract_strided_slice %5 {offsets = [5, 0], sizes = [1, 128], strides = [1, 1]} : vector<8x128xf32> to vector<1x128xf32>
    %12 = vector.extract_strided_slice %5 {offsets = [6, 0], sizes = [1, 128], strides = [1, 1]} : vector<8x128xf32> to vector<1x128xf32>
    %13 = vector.extract_strided_slice %5 {offsets = [7, 0], sizes = [1, 128], strides = [1, 1]} : vector<8x128xf32> to vector<1x128xf32>
    %14 = vector.broadcast %6 : vector<1x128xf32> to vector<16x128xf32>
    %15 = arith.mulf %1, %14 : vector<16x128xf32>
    %16 = vector.broadcast %7 : vector<1x128xf32> to vector<16x128xf32>
    %17 = arith.addf %15, %16 : vector<16x128xf32>
    %18 = arith.truncf %17 : vector<16x128xf32> to vector<16x128xbf16>
    %c0_10 = arith.constant 0 : index
    %c0_11 = arith.constant 0 : index
    %19 = vector.load %arg8[%c0_10, %c0_11] : memref<128x384xbf16, #tpu.memory_space<vmem>>, vector<128x384xbf16>
    %cst = arith.constant dense<0.000000e+00> : vector<16x384xf32>
    %20 = tpu.matmul %18, %19, %cst {dimension_numbers = #tpu.dot_dimension_numbers<[1], [0], [0], [1], [0, 0, 1, 1], [], []>} : vector<16x128xbf16>, vector<128x384xbf16>, vector<16x384xf32> -> vector<16x384xf32>
    %c0_12 = arith.constant 0 : index
    %c0_13 = arith.constant 0 : index
    %21 = vector.load %arg6[%c0_12, %c0_13] : memref<1x384xf32, #tpu.memory_space<vmem>>, vector<1x384xf32>
    %22 = vector.broadcast %21 : vector<1x384xf32> to vector<16x384xf32>
    %23 = arith.addf %20, %22 : vector<16x384xf32>
    %24 = vector.extract_strided_slice %23 {offsets = [0, 0], sizes = [16, 128], strides = [1, 1]} : vector<16x384xf32> to vector<16x128xf32>
    %25 = vector.shape_cast %24 : vector<16x128xf32> to vector<2x8x128xf32>
    %26 = vector.extract_strided_slice %23 {offsets = [0, 128], sizes = [16, 128], strides = [1, 1]} : vector<16x384xf32> to vector<16x128xf32>
    %27 = vector.shape_cast %26 : vector<16x128xf32> to vector<2x8x128xf32>
    %28 = vector.extract_strided_slice %23 {offsets = [0, 256], sizes = [16, 128], strides = [1, 1]} : vector<16x384xf32> to vector<16x128xf32>
    %29 = vector.shape_cast %28 : vector<16x128xf32> to vector<2x8x128xf32>
    %30 = vector.shape_cast %27 : vector<2x8x128xf32> to vector<2x1x8x128xf32>
    %31 = vector.shape_cast %30 : vector<2x1x8x128xf32> to vector<2x1x8x128xf32>
    %32 = vector.broadcast %31 : vector<2x1x8x128xf32> to vector<2x8x8x128xf32>
    %33 = vector.shape_cast %32 : vector<2x8x8x128xf32> to vector<2x64x128xf32>
    %34 = vector.shape_cast %4 : vector<64x128xf32> to vector<1x64x128xf32>
    %35 = vector.broadcast %34 : vector<1x64x128xf32> to vector<2x64x128xf32>
    %36 = arith.mulf %33, %35 : vector<2x64x128xf32>
    %37 = vector.shape_cast %29 : vector<2x8x128xf32> to vector<2x1x8x128xf32>
    %38 = vector.shape_cast %37 : vector<2x1x8x128xf32> to vector<2x1x8x128xf32>
    %39 = vector.broadcast %38 : vector<2x1x8x128xf32> to vector<2x8x8x128xf32>
    %40 = vector.shape_cast %39 : vector<2x8x8x128xf32> to vector<2x64x128xf32>
    %41 = vector.shape_cast %4 : vector<64x128xf32> to vector<1x64x128xf32>
    %42 = vector.broadcast %41 : vector<1x64x128xf32> to vector<2x64x128xf32>
    %43 = arith.mulf %40, %42 : vector<2x64x128xf32>
    "tpu.trace_start"() <{level = 10 : i32, message = "nqc,njc->nqj"}> : () -> ()
    %cst_14 = arith.constant dense<0.000000e+00> : vector<2x8x64xf32>
    %44 = tpu.matmul %25, %36, %cst_14 {dimension_numbers = #tpu.dot_dimension_numbers<[2], [2], [1], [1], [0, 0, 0, 1, 1, 1], [0], [0]>} : vector<2x8x128xf32>, vector<2x64x128xf32>, vector<2x8x64xf32> -> vector<2x8x64xf32>
    "tpu.trace_stop"() : () -> ()
    %45 = vector.shape_cast %2 : vector<2x64xf32> to vector<2x1x64xf32>
    %46 = vector.broadcast %45 : vector<2x1x64xf32> to vector<2x8x64xf32>
    %47 = arith.addf %44, %46 : vector<2x8x64xf32>
    %cst_15 = arith.constant dense<0xFF800000> : vector<2x8xf32>
    %48 = vector.multi_reduction <maximumf>, %47, %cst_15 [2] : vector<2x8x64xf32> to vector<2x8xf32>
    %49 = vector.shape_cast %48 : vector<2x8xf32> to vector<2x8x1xf32>
    %50 = vector.broadcast %49 : vector<2x8x1xf32> to vector<2x8x64xf32>
    %51 = arith.subf %47, %50 : vector<2x8x64xf32>
    %52 = math.exp %51 : vector<2x8x64xf32>
    %53 = vector.shape_cast %52 : vector<2x8x64xf32> to vector<16x64xf32>
    %cst_16 = arith.constant dense<0.000000e+00> : vector<16x128xf32>
    %54 = tpu.matmul %53, %4, %cst_16 {dimension_numbers = #tpu.dot_dimension_numbers<[1], [0], [0], [1], [0, 0, 1, 1], [], []>} : vector<16x64xf32>, vector<64x128xf32>, vector<16x128xf32> -> vector<16x128xf32>
    "tpu.trace_start"() <{level = 10 : i32, message = "nqj,njc->nqc"}> : () -> ()
    %cst_17 = arith.constant dense<0.000000e+00> : vector<2x8x128xf32>
    %55 = tpu.matmul %52, %43, %cst_17 {dimension_numbers = #tpu.dot_dimension_numbers<[2], [1], [1], [2], [0, 0, 0, 1, 1, 2], [0], [0]>} : vector<2x8x64xf32>, vector<2x64x128xf32>, vector<2x8x128xf32> -> vector<2x8x128xf32>
    "tpu.trace_stop"() : () -> ()
    %56 = vector.shape_cast %55 : vector<2x8x128xf32> to vector<16x128xf32>
    %57 = arith.divf %56, %54 : vector<16x128xf32>
    %58 = arith.truncf %57 : vector<16x128xf32> to vector<16x128xbf16>
    %c0_18 = arith.constant 0 : index
    %c0_19 = arith.constant 0 : index
    %59 = vector.load %arg9[%c0_18, %c0_19] : memref<128x128xbf16, #tpu.memory_space<vmem>>, vector<128x128xbf16>
    %cst_20 = arith.constant dense<0.000000e+00> : vector<16x128xf32>
    %60 = tpu.matmul %58, %59, %cst_20 {dimension_numbers = #tpu.dot_dimension_numbers<[1], [0], [0], [1], [0, 0, 1, 1], [], []>} : vector<16x128xbf16>, vector<128x128xbf16>, vector<16x128xf32> -> vector<16x128xf32>
    %61 = vector.broadcast %8 : vector<1x128xf32> to vector<16x128xf32>
    %62 = arith.addf %60, %61 : vector<16x128xf32>
    %63 = arith.addf %17, %62 : vector<16x128xf32>
    %cst_21 = arith.constant dense<0.000000e+00> : vector<16xf32>
    %64 = vector.multi_reduction <add>, %63, %cst_21 [1] : vector<16x128xf32> to vector<16xf32>
    %65 = vector.shape_cast %64 : vector<16xf32> to vector<16x1xf32>
    %cst_22 = arith.constant 1.280000e+02 : f32
    %66 = vector.broadcast %cst_22 : f32 to vector<16x1xf32>
    %67 = arith.divf %65, %66 : vector<16x1xf32>
    %68 = vector.broadcast %67 : vector<16x1xf32> to vector<16x128xf32>
    %69 = arith.subf %63, %68 : vector<16x128xf32>
    %70 = arith.mulf %69, %69 : vector<16x128xf32>
    %cst_23 = arith.constant dense<0.000000e+00> : vector<16xf32>
    %71 = vector.multi_reduction <add>, %70, %cst_23 [1] : vector<16x128xf32> to vector<16xf32>
    %72 = vector.shape_cast %71 : vector<16xf32> to vector<16x1xf32>
    %cst_24 = arith.constant 1.280000e+02 : f32
    %73 = vector.broadcast %cst_24 : f32 to vector<16x1xf32>
    %74 = arith.divf %72, %73 : vector<16x1xf32>
    %75 = vector.broadcast %67 : vector<16x1xf32> to vector<16x128xf32>
    %76 = arith.subf %63, %75 : vector<16x128xf32>
    %cst_25 = arith.constant 9.99999974E-6 : f32
    %77 = vector.broadcast %cst_25 : f32 to vector<16x1xf32>
    %78 = arith.addf %74, %77 : vector<16x1xf32>
    %79 = math.rsqrt %78 : vector<16x1xf32>
    %80 = vector.broadcast %79 : vector<16x1xf32> to vector<16x128xf32>
    %81 = arith.mulf %76, %80 : vector<16x128xf32>
    %82 = vector.broadcast %9 : vector<1x128xf32> to vector<16x128xf32>
    %83 = arith.mulf %81, %82 : vector<16x128xf32>
    %84 = vector.broadcast %10 : vector<1x128xf32> to vector<16x128xf32>
    %85 = arith.addf %83, %84 : vector<16x128xf32>
    %86 = arith.truncf %85 : vector<16x128xf32> to vector<16x128xbf16>
    %c0_26 = arith.constant 0 : index
    %c0_27 = arith.constant 0 : index
    %87 = vector.load %arg10[%c0_26, %c0_27] : memref<128x256xbf16, #tpu.memory_space<vmem>>, vector<128x256xbf16>
    %cst_28 = arith.constant dense<0.000000e+00> : vector<16x256xf32>
    %88 = tpu.matmul %86, %87, %cst_28 {dimension_numbers = #tpu.dot_dimension_numbers<[1], [0], [0], [1], [0, 0, 1, 1], [], []>} : vector<16x128xbf16>, vector<128x256xbf16>, vector<16x256xf32> -> vector<16x256xf32>
    %c0_29 = arith.constant 0 : index
    %c0_30 = arith.constant 0 : index
    %89 = vector.load %arg7[%c0_29, %c0_30] : memref<1x256xf32, #tpu.memory_space<vmem>>, vector<1x256xf32>
    %90 = vector.broadcast %89 : vector<1x256xf32> to vector<16x256xf32>
    %91 = arith.addf %88, %90 : vector<16x256xf32>
    %cst_31 = arith.constant 0.000000e+00 : f32
    %92 = vector.broadcast %cst_31 : f32 to vector<16x256xf32>
    %93 = arith.maximumf %91, %92 : vector<16x256xf32>
    %94 = arith.truncf %93 : vector<16x256xf32> to vector<16x256xbf16>
    %c0_32 = arith.constant 0 : index
    %c0_33 = arith.constant 0 : index
    %95 = vector.load %arg11[%c0_32, %c0_33] : memref<256x128xbf16, #tpu.memory_space<vmem>>, vector<256x128xbf16>
    %cst_34 = arith.constant dense<0.000000e+00> : vector<16x128xf32>
    %96 = tpu.matmul %94, %95, %cst_34 {dimension_numbers = #tpu.dot_dimension_numbers<[1], [0], [0], [1], [0, 0, 1, 1], [], []>} : vector<16x256xbf16>, vector<256x128xbf16>, vector<16x128xf32> -> vector<16x128xf32>
    %97 = vector.broadcast %11 : vector<1x128xf32> to vector<16x128xf32>
    %98 = arith.addf %96, %97 : vector<16x128xf32>
    %99 = arith.addf %85, %98 : vector<16x128xf32>
    %cst_35 = arith.constant dense<0.000000e+00> : vector<16xf32>
    %100 = vector.multi_reduction <add>, %99, %cst_35 [1] : vector<16x128xf32> to vector<16xf32>
    %101 = vector.shape_cast %100 : vector<16xf32> to vector<16x1xf32>
    %cst_36 = arith.constant 1.280000e+02 : f32
    %102 = vector.broadcast %cst_36 : f32 to vector<16x1xf32>
    %103 = arith.divf %101, %102 : vector<16x1xf32>
    %104 = vector.broadcast %103 : vector<16x1xf32> to vector<16x128xf32>
    %105 = arith.subf %99, %104 : vector<16x128xf32>
    %106 = arith.mulf %105, %105 : vector<16x128xf32>
    %cst_37 = arith.constant dense<0.000000e+00> : vector<16xf32>
    %107 = vector.multi_reduction <add>, %106, %cst_37 [1] : vector<16x128xf32> to vector<16xf32>
    %108 = vector.shape_cast %107 : vector<16xf32> to vector<16x1xf32>
    %cst_38 = arith.constant 1.280000e+02 : f32
    %109 = vector.broadcast %cst_38 : f32 to vector<16x1xf32>
    %110 = arith.divf %108, %109 : vector<16x1xf32>
    %111 = vector.broadcast %103 : vector<16x1xf32> to vector<16x128xf32>
    %112 = arith.subf %99, %111 : vector<16x128xf32>
    %cst_39 = arith.constant 9.99999974E-6 : f32
    %113 = vector.broadcast %cst_39 : f32 to vector<16x1xf32>
    %114 = arith.addf %110, %113 : vector<16x1xf32>
    %115 = math.rsqrt %114 : vector<16x1xf32>
    %116 = vector.broadcast %115 : vector<16x1xf32> to vector<16x128xf32>
    %117 = arith.mulf %112, %116 : vector<16x128xf32>
    %118 = vector.broadcast %12 : vector<1x128xf32> to vector<16x128xf32>
    %119 = arith.mulf %117, %118 : vector<16x128xf32>
    %120 = vector.broadcast %13 : vector<1x128xf32> to vector<16x128xf32>
    %121 = arith.addf %119, %120 : vector<16x128xf32>
    %122 = vector.shape_cast %121 : vector<16x128xf32> to vector<2x8x128xf32>
    %123 = vector.shape_cast %3 : vector<2x8xf32> to vector<2x8x1xf32>
    %124 = vector.broadcast %123 : vector<2x8x1xf32> to vector<2x8x128xf32>
    %125 = arith.mulf %122, %124 : vector<2x8x128xf32>
    %cst_40 = arith.constant dense<0.000000e+00> : vector<2x128xf32>
    %126 = vector.multi_reduction <add>, %125, %cst_40 [1] : vector<2x8x128xf32> to vector<2x128xf32>
    %127 = arith.mulf %126, %126 : vector<2x128xf32>
    %cst_41 = arith.constant dense<0.000000e+00> : vector<2xf32>
    %128 = vector.multi_reduction <add>, %127, %cst_41 [1] : vector<2x128xf32> to vector<2xf32>
    %129 = vector.shape_cast %128 : vector<2xf32> to vector<2x1xf32>
    %cst_42 = arith.constant 1.000000e-24 : f32
    %130 = vector.broadcast %cst_42 : f32 to vector<2x1xf32>
    %131 = arith.maximumf %129, %130 : vector<2x1xf32>
    %132 = math.rsqrt %131 : vector<2x1xf32>
    %133 = vector.broadcast %132 : vector<2x1xf32> to vector<2x128xf32>
    %134 = arith.mulf %126, %133 : vector<2x128xf32>
    %c0_43 = arith.constant 0 : index
    %c0_44 = arith.constant 0 : index
    %135 = vector.load %arg12[%c0_43, %c0_44] : memref<2x128xf32, #tpu.memory_space<vmem>>, vector<2x128xf32>
    tpu.vector_store %arg12[%c0_43, %c0_44], %134 {strides = array<i32>} : memref<2x128xf32, #tpu.memory_space<vmem>>, vector<2x128xf32>,
    return
  }
  func.func @transform_0(%arg0: i32) -> (i32, i32, i32) {
    %c0_i32 = arith.constant 0 : i32
    %c0_i32_0 = arith.constant 0 : i32
    %c0_i32_1 = arith.constant 0 : i32
    %c0_i32_2 = arith.constant 0 : i32
    return %c0_i32, %c0_i32_0, %c0_i32_1 : i32, i32, i32
  }
  func.func @transform_1(%arg0: i32) -> (i32, i32) {
    %c0_i32 = arith.constant 0 : i32
    %c0_i32_0 = arith.constant 0 : i32
    %c0_i32_1 = arith.constant 0 : i32
    return %c0_i32, %c0_i32_0 : i32, i32
  }
  func.func @transform_2(%arg0: i32) -> (i32, i32) {
    %c0_i32 = arith.constant 0 : i32
    %c0_i32_0 = arith.constant 0 : i32
    %c0_i32_1 = arith.constant 0 : i32
    return %c0_i32, %c0_i32_0 : i32, i32
  }
  func.func @transform_3(%arg0: i32) -> (i32, i32) {
    %c0_i32 = arith.constant 0 : i32
    %c0_i32_0 = arith.constant 0 : i32
    %c0_i32_1 = arith.constant 0 : i32
    return %c0_i32, %c0_i32_0 : i32, i32
  }
  func.func @transform_4(%arg0: i32) -> (i32, i32) {
    %c0_i32 = arith.constant 0 : i32
    %c0_i32_0 = arith.constant 0 : i32
    %c0_i32_1 = arith.constant 0 : i32
    return %c0_i32, %c0_i32_0 : i32, i32
  }
  func.func @transform_5(%arg0: i32) -> (i32, i32) {
    %c0_i32 = arith.constant 0 : i32
    %c0_i32_0 = arith.constant 0 : i32
    %c0_i32_1 = arith.constant 0 : i32
    return %c0_i32, %c0_i32_0 : i32, i32
  }
  func.func @transform_6(%arg0: i32) -> (i32, i32) {
    %c0_i32 = arith.constant 0 : i32
    %c0_i32_0 = arith.constant 0 : i32
    %c0_i32_1 = arith.constant 0 : i32
    return %c0_i32, %c0_i32_0 : i32, i32
  }
  func.func @transform_7(%arg0: i32) -> (i32, i32) {
    %c0_i32 = arith.constant 0 : i32
    %c0_i32_0 = arith.constant 0 : i32
    %c0_i32_1 = arith.constant 0 : i32
    return %c0_i32, %c0_i32_0 : i32, i32
  }
  func.func @transform_8(%arg0: i32) -> (i32, i32) {
    %c0_i32 = arith.constant 0 : i32
    %c0_i32_0 = arith.constant 0 : i32
    %c0_i32_1 = arith.constant 0 : i32
    return %c0_i32, %c0_i32_0 : i32, i32
  }
  func.func @transform_9(%arg0: i32) -> (i32, i32) {
    %c0_i32 = arith.constant 0 : i32
    %c0_i32_0 = arith.constant 0 : i32
    %c0_i32_1 = arith.constant 0 : i32
    return %c0_i32, %c0_i32_0 : i32, i32
  }
  func.func @transform_10(%arg0: i32) -> (i32, i32) {
    %c0_i32 = arith.constant 0 : i32
    %c0_i32_0 = arith.constant 0 : i32
    %c0_i32_1 = arith.constant 0 : i32
    return %c0_i32, %c0_i32_0 : i32, i32
  }
  func.func @transform_11(%arg0: i32) -> (i32, i32) {
    %c0_i32 = arith.constant 0 : i32
    %c0_i32_0 = arith.constant 0 : i32
    %c0_i32_1 = arith.constant 0 : i32
    return %c0_i32, %c0_i32_0 : i32, i32
  }
}

</mosaic_0001>

<llo_original>
// kernel: tpu_custom_call.1
$region0: #{tpu_custom_call.1}
  #allocation0 [shape = 'u32[]', space=smem, size = 0x4, offset = 0x4, fixed_abs, tag = 'smem constant byte address 0x4 - core index']
  #allocation1 [shape = 'u32[144,128]{1,0:T(1,128)}', space=vmem, size = 0x12000, scoped, tag = 'internal scratch']
  %s0 = inlined_call_operand.hbm [shape: f32[2,8,128], index: 0, kind: input, shape index: {}]
  %s1 = inlined_call_operand.vmem [shape: f32[2,64], index: 1, kind: input, shape index: {}]
  %s2 = inlined_call_operand.vmem [shape: f32[2,8], index: 2, kind: input, shape index: {}]
  %s3 = inlined_call_operand.hbm [shape: f32[64,128], index: 3, kind: input, shape index: {}]
  %s4 = inlined_call_operand.vmem [shape: f32[8,128], index: 4, kind: input, shape index: {}]
  %s5 = inlined_call_operand.vmem [shape: f32[1,384], index: 5, kind: input, shape index: {}]
  %s6 = inlined_call_operand.vmem [shape: f32[1,256], index: 6, kind: input, shape index: {}]
  %s7 = inlined_call_operand.hbm [shape: bf16[128,384], index: 7, kind: input, shape index: {}]
  %s8 = inlined_call_operand.hbm [shape: bf16[128,128], index: 8, kind: input, shape index: {}]
  %s9 = inlined_call_operand.hbm [shape: bf16[128,256], index: 9, kind: input, shape index: {}]
  %s10 = inlined_call_operand.hbm [shape: bf16[256,128], index: 10, kind: input, shape index: {}]
  %s11 = inlined_call_operand.hbm [shape: f32[2,128], index: 11, kind: output, shape index: {}]
  %s12 = sld [smem:[#allocation0]]
  $region78: #{tpu_custom_call.1} parent=0
    _
  %s14 = ssub.s32 1, %s12
  %s15 = scalar_select 0, %s14, %s12
  $region1: #{tpu_custom_call.1} parent=0
    #allocation2 [shape = 'u8[8192]{0}', space=vmem, size = 0x2000, scoped, tag = 'input window, operand 0, single buffered']
    #allocation3 [shape = 's32[1]{0}', space=sflag, size = 0x4, scoped, tag = 'scoped memory for tpu_custom_call.1']
    #allocation4 [shape = 's32[1]{0}', space=sflag, size = 0x4, scoped, tag = 'scoped memory for tpu_custom_call.1']
    #allocation5 [shape = 'u8[32768]{0}', space=vmem, size = 0x8000, scoped, tag = 'input window, operand 3, single buffered']
    #allocation6 [shape = 's32[1]{0}', space=sflag, size = 0x4, scoped, tag = 'scoped memory for tpu_custom_call.1']
    #allocation7 [shape = 'u8[98304]{0}', space=vmem, size = 0x18000, scoped, tag = 'input window, operand 7, single buffered']
    #allocation8 [shape = 'u8[32768]{0}', space=vmem, size = 0x8000, scoped, tag = 'input window, operand 8, single buffered']
    #allocation9 [shape = 's32[1]{0}', space=sflag, size = 0x4, scoped, tag = 'scoped memory for tpu_custom_call.1']
    #allocation10 [shape = 'u8[65536]{0}', space=vmem, size = 0x10000, scoped, tag = 'input window, operand 9, single buffered']
    #allocation11 [shape = 'u8[65536]{0}', space=vmem, size = 0x10000, scoped, tag = 'input window, operand 10, single buffered']
    #allocation12 [shape = 's32[1]{0}', space=sflag, size = 0x4, scoped, tag = 'scoped memory for tpu_custom_call.1']
    #allocation13 [shape = 'u8[1024]{0}', space=vmem, size = 0x400, scoped, tag = 'output window, operand 0, single buffered']
    %16 = vsyncpa [#allocation3], 0
    %17 = vsyncpa [#allocation6], 0
    %18 = vsyncpa [#allocation9], 0
    %19 = vsyncpa [#allocation12], 0
    %20 = vsyncpa [#allocation4], 0
    // Predicated region
    $region2: #{tpu_custom_call.1} parent=1 // pred_check
      _
    $region3: #{tpu_custom_call.1} parent=1 // pred_check_branch
      %22 = sbr.rel (0) target = $region5
    $region4: #{tpu_custom_call.1} parent=1 // pred_region
      %s24 = ssub.s32 256, 256
      %25 = vsyncadd [#allocation3], %s24
      %s26 = sshll.u32 [#allocation2], 4
      %s27 = int_to_ptr.vmem [resolvable:$true] %s26
      %32 = dma.hbm_to_vmem [thread:$0]  %s0, 256, %s27, [#allocation3], 128, 128, 8
    $region5: #{tpu_custom_call.1} parent=1 // pred_fallthru
      _
    // Predicated region
    $region6: #{tpu_custom_call.1} parent=1 // pred_check
      _
    $region7: #{tpu_custom_call.1} parent=1 // pred_check_branch
      %34 = sbr.rel (0) target = $region9
    $region8: #{tpu_custom_call.1} parent=1 // pred_region
      _
    $region9: #{tpu_custom_call.1} parent=1 // pred_fallthru
      _
    // Predicated region
    $region10: #{tpu_custom_call.1} parent=1 // pred_check
      _
    $region11: #{tpu_custom_call.1} parent=1 // pred_check_branch
      %36 = sbr.rel (0) target = $region13
    $region12: #{tpu_custom_call.1} parent=1 // pred_region
      _
    $region13: #{tpu_custom_call.1} parent=1 // pred_fallthru
      _
    // Predicated region
    $region14: #{tpu_custom_call.1} parent=1 // pred_check
      _
    $region15: #{tpu_custom_call.1} parent=1 // pred_check_branch
      %38 = sbr.rel (0) target = $region17
    $region16: #{tpu_custom_call.1} parent=1 // pred_region
      %s40 = ssub.s32 1024, 1024
      %41 = vsyncadd [#allocation6], %s40
      %s42 = sshll.u32 [#allocation5], 4
      %s43 = int_to_ptr.vmem [resolvable:$true] %s42
      %48 = dma.hbm_to_vmem [thread:$0]  %s3, 1024, %s43, [#allocation6], 128, 128, 8
    $region17: #{tpu_custom_call.1} parent=1 // pred_fallthru
      _
    // Predicated region
    $region18: #{tpu_custom_call.1} parent=1 // pred_check
      _
    $region19: #{tpu_custom_call.1} parent=1 // pred_check_branch
      %50 = sbr.rel (0) target = $region21
    $region20: #{tpu_custom_call.1} parent=1 // pred_region
      _
    $region21: #{tpu_custom_call.1} parent=1 // pred_fallthru
      _
    // Predicated region
    $region22: #{tpu_custom_call.1} parent=1 // pred_check
      _
    $region23: #{tpu_custom_call.1} parent=1 // pred_check_branch
      %52 = sbr.rel (0) target = $region25
    $region24: #{tpu_custom_call.1} parent=1 // pred_region
      _
    $region25: #{tpu_custom_call.1} parent=1 // pred_fallthru
      _
    // Predicated region
    $region26: #{tpu_custom_call.1} parent=1 // pred_check
      _
    $region27: #{tpu_custom_call.1} parent=1 // pred_check_branch
      %54 = sbr.rel (0) target = $region29
    $region28: #{tpu_custom_call.1} parent=1 // pred_region
      _
    $region29: #{tpu_custom_call.1} parent=1 // pred_fallthru
      _
    // Predicated region
    $region30: #{tpu_custom_call.1} parent=1 // pred_check
      _
    $region31: #{tpu_custom_call.1} parent=1 // pred_check_branch
      %56 = sbr.rel (0) target = $region33
    $region32: #{tpu_custom_call.1} parent=1 // pred_region
      %s58 = ssub.s32 3072, 3072
      %59 = vsyncadd [#allocation6], %s58
      %s60 = sshll.u32 [#allocation7], 4
      %s61 = int_to_ptr.vmem [resolvable:$true] %s60
      %66 = dma.hbm_to_vmem [thread:$0]  %s7, 3072, %s61, [#allocation6], 192, 192, 12
    $region33: #{tpu_custom_call.1} parent=1 // pred_fallthru
      _
    // Predicated region
    $region34: #{tpu_custom_call.1} parent=1 // pred_check
      _
    $region35: #{tpu_custom_call.1} parent=1 // pred_check_branch
      %68 = sbr.rel (0) target = $region37
    $region36: #{tpu_custom_call.1} parent=1 // pred_region
      %s70 = ssub.s32 1024, 1024
      %71 = vsyncadd [#allocation9], %s70
      %s72 = sshll.u32 [#allocation8], 4
      %s73 = int_to_ptr.vmem [resolvable:$true] %s72
      %78 = dma.hbm_to_vmem [thread:$0]  %s8, 1024, %s73, [#allocation9], 64, 64, 4
    $region37: #{tpu_custom_call.1} parent=1 // pred_fallthru
      _
    // Predicated region
    $region38: #{tpu_custom_call.1} parent=1 // pred_check
      _
    $region39: #{tpu_custom_call.1} parent=1 // pred_check_branch
      %80 = sbr.rel (0) target = $region41
    $region40: #{tpu_custom_call.1} parent=1 // pred_region
      %s82 = ssub.s32 2048, 2048
      %83 = vsyncadd [#allocation9], %s82
      %s84 = sshll.u32 [#allocation10], 4
      %s85 = int_to_ptr.vmem [resolvable:$true] %s84
      %90 = dma.hbm_to_vmem [thread:$0]  %s9, 2048, %s85, [#allocation9], 128, 128, 8
    $region41: #{tpu_custom_call.1} parent=1 // pred_fallthru
      _
    // Predicated region
    $region42: #{tpu_custom_call.1} parent=1 // pred_check
      _
    $region43: #{tpu_custom_call.1} parent=1 // pred_check_branch
      %92 = sbr.rel (0) target = $region45
    $region44: #{tpu_custom_call.1} parent=1 // pred_region
      %s94 = ssub.s32 2048, 2048
      %95 = vsyncadd [#allocation12], %s94
      %s96 = sshll.u32 [#allocation11], 4
      %s97 = int_to_ptr.vmem [resolvable:$true] %s96
      %102 = dma.hbm_to_vmem [thread:$0]  %s10, 2048, %s97, [#allocation12], 64, 64, 4
    $region45: #{tpu_custom_call.1} parent=1 // pred_fallthru
      _
    // Predicated region
    $region46: #{tpu_custom_call.1} parent=1 // pred_check
      _
    $region47: #{tpu_custom_call.1} parent=1 // pred_check_branch
      %104 = sbr.rel (0) target = $region49
    $region48: #{tpu_custom_call.1} parent=1 // pred_region
      %105 = dma.done [#allocation3], 256
    $region49: #{tpu_custom_call.1} parent=1 // pred_fallthru
      _
    // Predicated region
    $region50: #{tpu_custom_call.1} parent=1 // pred_check
      _
    $region51: #{tpu_custom_call.1} parent=1 // pred_check_branch
      %107 = sbr.rel (0) target = $region53
    $region52: #{tpu_custom_call.1} parent=1 // pred_region
      %108 = dma.done [#allocation6], 1024
    $region53: #{tpu_custom_call.1} parent=1 // pred_fallthru
      _
    // Predicated region
    $region54: #{tpu_custom_call.1} parent=1 // pred_check
      _
    $region55: #{tpu_custom_call.1} parent=1 // pred_check_branch
      %110 = sbr.rel (0) target = $region57
    $region56: #{tpu_custom_call.1} parent=1 // pred_region
      %111 = dma.done [#allocation6], 3072
    $region57: #{tpu_custom_call.1} parent=1 // pred_fallthru
      _
    // Predicated region
    $region58: #{tpu_custom_call.1} parent=1 // pred_check
      _
    $region59: #{tpu_custom_call.1} parent=1 // pred_check_branch
      %113 = sbr.rel (0) target = $region61
    $region60: #{tpu_custom_call.1} parent=1 // pred_region
      %114 = dma.done [#allocation9], 1024
    $region61: #{tpu_custom_call.1} parent=1 // pred_fallthru
      _
    // Predicated region
    $region62: #{tpu_custom_call.1} parent=1 // pred_check
      _
    $region63: #{tpu_custom_call.1} parent=1 // pred_check_branch
      %116 = sbr.rel (0) target = $region65
    $region64: #{tpu_custom_call.1} parent=1 // pred_region
      %117 = dma.done [#allocation9], 2048
    $region65: #{tpu_custom_call.1} parent=1 // pred_fallthru
      _
    // Predicated region
    $region66: #{tpu_custom_call.1} parent=1 // pred_check
      _
    $region67: #{tpu_custom_call.1} parent=1 // pred_check_branch
      %119 = sbr.rel (0) target = $region69
    $region68: #{tpu_custom_call.1} parent=1 // pred_region
      %120 = dma.done [#allocation12], 2048
    $region69: #{tpu_custom_call.1} parent=1 // pred_fallthru
      _
    %v122 = vld [vmem:[#allocation2] sm:$0xff]
    %v123 = vld [vmem:[#allocation2 + $0x8] sm:$0xff]
    %v124 = vld [vmem:[%s1] sm:$0x3]
    %v125 = vld [vmem:[%s2] sm:$0x3]
    %v126 = vld [vmem:[#allocation5] sm:$0xff]
    %v127 = vld [vmem:[#allocation5 + $0x8] sm:$0xff]
    %v128 = vld [vmem:[#allocation5 + $0x10] sm:$0xff]
    %v129 = vld [vmem:[#allocation5 + $0x18] sm:$0xff]
    %v130 = vld [vmem:[#allocation5 + $0x20] sm:$0xff]
    %v131 = vld [vmem:[#allocation5 + $0x28] sm:$0xff]
    %v132 = vld [vmem:[#allocation5 + $0x30] sm:$0xff]
    %v133 = vld [vmem:[#allocation5 + $0x38] sm:$0xff]
    %v134 = vld [vmem:[%s4] sm:$0xff]
    %v135 = vlaneseq
    %v136 = vshrl.u32 %v135, 7
    %v137 = vsub.s32 0, %v136
    %v138 = vrot.slane %v134, %v137
    %v139 = vmul.f32 %v122, %v138
    %v140 = vmul.f32 %v123, %v138
    %v141 = vlaneseq
    %v142 = vshrl.u32 %v141, 7
    %v143 = vsub.s32 1, %v142
    %v144 = vrot.slane %v134, %v143
    %v145 = vadd.f32 %v139, %v144
    %v146 = vadd.f32 %v140, %v144
    %v147 = vpack.c.bf16 %v146, %v145
    %v148 = vld [vmem:[#allocation7] sm:$0xff]
    %v149 = vld [vmem:[#allocation7 + $0x8] sm:$0xf]
    %v150 = vld [vmem:[#allocation7 + $0xc] sm:$0xff]
    %v151 = vld [vmem:[#allocation7 + $0x14] sm:$0xf]
    %v152 = vld [vmem:[#allocation7 + $0x18] sm:$0xff]
    %v153 = vld [vmem:[#allocation7 + $0x20] sm:$0xf]
    %v154 = vld [vmem:[#allocation7 + $0x24] sm:$0xff]
    %v155 = vld [vmem:[#allocation7 + $0x2c] sm:$0xf]
    %v156 = vld [vmem:[#allocation7 + $0x30] sm:$0xff]
    %v157 = vld [vmem:[#allocation7 + $0x38] sm:$0xf]
    %v158 = vld [vmem:[#allocation7 + $0x3c] sm:$0xff]
    %v159 = vld [vmem:[#allocation7 + $0x44] sm:$0xf]
    %v160 = vld [vmem:[#allocation7 + $0x48] sm:$0xff]
    %v161 = vld [vmem:[#allocation7 + $0x50] sm:$0xf]
    %v162 = vld [vmem:[#allocation7 + $0x54] sm:$0xff]
    %v163 = vld [vmem:[#allocation7 + $0x5c] sm:$0xf]
    %v164 = vld [vmem:[#allocation7 + $0x60] sm:$0xff]
    %v165 = vld [vmem:[#allocation7 + $0x68] sm:$0xf]
    %v166 = vld [vmem:[#allocation7 + $0x6c] sm:$0xff]
    %v167 = vld [vmem:[#allocation7 + $0x74] sm:$0xf]
    %v168 = vld [vmem:[#allocation7 + $0x78] sm:$0xff]
    %v169 = vld [vmem:[#allocation7 + $0x80] sm:$0xf]
    %v170 = vld [vmem:[#allocation7 + $0x84] sm:$0xff]
    %v171 = vld [vmem:[#allocation7 + $0x8c] sm:$0xf]
    %v172 = vld [vmem:[#allocation7 + $0x90] sm:$0xff]
    %v173 = vld [vmem:[#allocation7 + $0x98] sm:$0xf]
    %v174 = vld [vmem:[#allocation7 + $0x9c] sm:$0xff]
    %v175 = vld [vmem:[#allocation7 + $0xa4] sm:$0xf]
    %v176 = vld [vmem:[#allocation7 + $0xa8] sm:$0xff]
    %v177 = vld [vmem:[#allocation7 + $0xb0] sm:$0xf]
    %v178 = vld [vmem:[#allocation7 + $0xb4] sm:$0xff]
    %v179 = vld [vmem:[#allocation7 + $0xbc] sm:$0xf]
    %v180 = vld [vmem:[%s5] sm:$0x7]
    %v182 = vlaneseq
    %v183 = vshrl.u32 %v182, 7
    %v184 = vsub.s32 0, %v183
    %v185 = vrot.slane %v180, %v184
    %v186 = vlaneseq
    %v187 = vshrl.u32 %v186, 7
    %v188 = vsub.s32 1, %v187
    %v189 = vrot.slane %v180, %v188
    %v190 = vlaneseq
    %v191 = vshrl.u32 %v190, 7
    %v192 = vsub.s32 2, %v191
    %v193 = vrot.slane %v180, %v192
    %v229 = vunpack.c.l.b16 %v148
    %v230 = vunpack.c.h.b16 %v148
    %v231 = vunpack.c.l.b16 %v149
    %v232 = vunpack.c.l.b16 %v150
    %v233 = vunpack.c.h.b16 %v150
    %v234 = vunpack.c.l.b16 %v151
    %v235 = vunpack.c.l.b16 %v152
    %v236 = vunpack.c.h.b16 %v152
    %v237 = vunpack.c.l.b16 %v153
    %v238 = vunpack.c.l.b16 %v154
    %v239 = vunpack.c.h.b16 %v154
    %v240 = vunpack.c.l.b16 %v155
    %v241 = vunpack.c.l.b16 %v156
    %v242 = vunpack.c.h.b16 %v156
    %v243 = vunpack.c.l.b16 %v157
    %v244 = vunpack.c.l.b16 %v158
    %v245 = vunpack.c.h.b16 %v158
    %v246 = vunpack.c.l.b16 %v159
    %v247 = vunpack.c.l.b16 %v160
    %v248 = vunpack.c.h.b16 %v160
    %v249 = vunpack.c.l.b16 %v161
    %v250 = vunpack.c.l.b16 %v162
    %v251 = vunpack.c.h.b16 %v162
    %v252 = vunpack.c.l.b16 %v163
    %v253 = vunpack.c.l.b16 %v164
    %v254 = vunpack.c.h.b16 %v164
    %v255 = vunpack.c.l.b16 %v165
    %v256 = vunpack.c.l.b16 %v166
    %v257 = vunpack.c.h.b16 %v166
    %v258 = vunpack.c.l.b16 %v167
    %v259 = vunpack.c.l.b16 %v168
    %v260 = vunpack.c.h.b16 %v168
    %v261 = vunpack.c.l.b16 %v169
    %v262 = vunpack.c.l.b16 %v170
    %v263 = vunpack.c.h.b16 %v170
    %v264 = vunpack.c.l.b16 %v171
    %v265 = vunpack.c.l.b16 %v172
    %v266 = vunpack.c.h.b16 %v172
    %v267 = vunpack.c.l.b16 %v173
    %v268 = vunpack.c.l.b16 %v174
    %v269 = vunpack.c.h.b16 %v174
    %v270 = vunpack.c.l.b16 %v175
    %v271 = vunpack.c.l.b16 %v176
    %v272 = vunpack.c.h.b16 %v176
    %v273 = vunpack.c.l.b16 %v177
    %v274 = vunpack.c.l.b16 %v178
    %v275 = vunpack.c.h.b16 %v178
    %v276 = vunpack.c.l.b16 %v179
    %v277 = vpack.c.b16 %v232, %v229
    %v278 = vpack.c.b16 %v233, %v230
    %v279 = vpack.c.b16 %v234, %v231
    %v280 = vpack.c.b16 %v238, %v235
    %v281 = vpack.c.b16 %v239, %v236
    %v282 = vpack.c.b16 %v240, %v237
    %v283 = vpack.c.b16 %v244, %v241
    %v284 = vpack.c.b16 %v245, %v242
    %v285 = vpack.c.b16 %v246, %v243
    %v286 = vpack.c.b16 %v250, %v247
    %v287 = vpack.c.b16 %v251, %v248
    %v288 = vpack.c.b16 %v252, %v249
    %v289 = vpack.c.b16 %v256, %v253
    %v290 = vpack.c.b16 %v257, %v254
    %v291 = vpack.c.b16 %v258, %v255
    %v292 = vpack.c.b16 %v262, %v259
    %v293 = vpack.c.b16 %v263, %v260
    %v294 = vpack.c.b16 %v264, %v261
    %v295 = vpack.c.b16 %v268, %v265
    %v296 = vpack.c.b16 %v269, %v266
    %v297 = vpack.c.b16 %v270, %v267
    %v298 = vpack.c.b16 %v274, %v271
    %v299 = vpack.c.b16 %v275, %v272
    %v300 = vpack.c.b16 %v276, %v273
    %325 = vmatprep.subr.bf16.mxu0 %v278
    %326 = vmatpush1.bf16.msra.mxu0 %v277
    %327 = vmatprep.subr.bf16.mxu0 %v281
    %328 = vmatpush1.bf16.msra.mxu0 %v280
    %329 = vmatprep.subr.bf16.mxu0 %v284
    %330 = vmatpush1.bf16.msra.mxu0 %v283
    %331 = vmatprep.subr.bf16.mxu0 %v287
    %332 = vmatpush1.bf16.msra.mxu0 %v286
    %333 = vmatprep.subr.bf16.mxu0 %v290
    %334 = vmatpush1.bf16.msra.mxu0 %v289
    %335 = vmatprep.subr.bf16.mxu0 %v293
    %336 = vmatpush1.bf16.msra.mxu0 %v292
    %337 = vmatprep.subr.bf16.mxu0 %v296
    %338 = vmatpush1.bf16.msra.mxu0 %v295
    %339 = vmatprep.subr.bf16.mxu0 %v299
    %340 = vmatpush1.bf16.msra.mxu0 %v298
    %341 = vmatprep.subr.bf16.mxu0 0
    %342 = vmatpush1.bf16.msra.mxu0 0
    %343 = vmatprep.subr.bf16.mxu0 0
    %344 = vmatpush1.bf16.msra.mxu0 0
    %345 = vmatprep.subr.bf16.mxu0 0
    %346 = vmatpush1.bf16.msra.mxu0 0
    %347 = vmatprep.subr.bf16.mxu0 0
    %348 = vmatpush1.bf16.msra.mxu0 0
    %349 = vmatprep.subr.bf16.mxu0 0
    %350 = vmatpush1.bf16.msra.mxu0 0
    %351 = vmatprep.subr.bf16.mxu0 0
    %352 = vmatpush1.bf16.msra.mxu0 0
    %353 = vmatprep.subr.bf16.mxu0 0
    %354 = vmatpush1.bf16.msra.mxu0 0
    %355 = vmatprep.subr.bf16.mxu0 0
    %356 = vmatpush1.bf16.msra.mxu0 0
    %357 = vmatprep.mubr.bf16.mxu0 0
    %358 = vmatmul.mubr.bf16.gmra.mrb[0].mxu0 %v147
    %v359 = vpop.f32.mrb[0].mxu0
    %v360 = vadd.f32 %v185, %v359
    %v361 = vpop.f32.mrb[0].mxu0
    %v362 = vadd.f32 %v189, %v361
    %v363 = vpop.f32.mrb[0].mxu0
    %v364 = vadd.f32 %v185, %v363
    %v365 = vpop.f32.mrb[0].mxu0
    %v366 = vadd.f32 %v189, %v365
    %367 = vdwg.mxu0
    %368 = vmatprep.subr.bf16.mxu0 0
    %369 = vmatpush1.bf16.msra.mxu0 %v279
    %370 = vmatprep.subr.bf16.mxu0 0
    %371 = vmatpush1.bf16.msra.mxu0 %v282
    %372 = vmatprep.subr.bf16.mxu0 0
    %373 = vmatpush1.bf16.msra.mxu0 %v285
    %374 = vmatprep.subr.bf16.mxu0 0
    %375 = vmatpush1.bf16.msra.mxu0 %v288
    %376 = vmatprep.subr.bf16.mxu0 0
    %377 = vmatpush1.bf16.msra.mxu0 %v291
    %378 = vmatprep.subr.bf16.mxu0 0
    %379 = vmatpush1.bf16.msra.mxu0 %v294
    %380 = vmatprep.subr.bf16.mxu0 0
    %381 = vmatpush1.bf16.msra.mxu0 %v297
    %382 = vmatprep.subr.bf16.mxu0 0
    %383 = vmatpush1.bf16.msra.mxu0 %v300
    %384 = vmatprep.subr.bf16.mxu0 0
    %385 = vmatpush1.bf16.msra.mxu0 0
    %386 = vmatprep.subr.bf16.mxu0 0
    %387 = vmatpush1.bf16.msra.mxu0 0
    %388 = vmatprep.subr.bf16.mxu0 0
    %389 = vmatpush1.bf16.msra.mxu0 0
    %390 = vmatprep.subr.bf16.mxu0 0
    %391 = vmatpush1.bf16.msra.mxu0 0
    %392 = vmatprep.subr.bf16.mxu0 0
    %393 = vmatpush1.bf16.msra.mxu0 0
    %394 = vmatprep.subr.bf16.mxu0 0
    %395 = vmatpush1.bf16.msra.mxu0 0
    %396 = vmatprep.subr.bf16.mxu0 0
    %397 = vmatpush1.bf16.msra.mxu0 0
    %398 = vmatprep.subr.bf16.mxu0 0
    %399 = vmatpush1.bf16.msra.mxu0 0
    %400 = vmatprep.mubr.bf16.mxu0 0
    %401 = vmatmul.mubr.bf16.gmra.mrb[0].mxu0 %v147
    %v402 = vpop.f32.mrb[0].mxu0
    %v403 = vadd.f32 %v193, %v402
    %v404 = vpop.f32.mrb[0].mxu0
    %v405 = vpop.f32.mrb[0].mxu0
    %v406 = vadd.f32 %v193, %v405
    %v407 = vpop.f32.mrb[0].mxu0
    %408 = vdwg.mxu0
    %v409 = vmul.f32 %v362, %v126
    %v410 = vmul.f32 %v362, %v127
    %v411 = vmul.f32 %v362, %v128
    %v412 = vmul.f32 %v362, %v129
    %v413 = vmul.f32 %v362, %v130
    %v414 = vmul.f32 %v362, %v131
    %v415 = vmul.f32 %v362, %v132
    %v416 = vmul.f32 %v362, %v133
    %v417 = vmul.f32 %v366, %v126
    %v418 = vmul.f32 %v366, %v127
    %v419 = vmul.f32 %v366, %v128
    %v420 = vmul.f32 %v366, %v129
    %v421 = vmul.f32 %v366, %v130
    %v422 = vmul.f32 %v366, %v131
    %v423 = vmul.f32 %v366, %v132
    %v424 = vmul.f32 %v366, %v133
    %v425 = vmul.f32 %v403, %v126
    %v426 = vmul.f32 %v403, %v127
    %v427 = vmul.f32 %v403, %v128
    %v428 = vmul.f32 %v403, %v129
    %v429 = vmul.f32 %v403, %v130
    %v430 = vmul.f32 %v403, %v131
    %v431 = vmul.f32 %v403, %v132
    %v432 = vmul.f32 %v403, %v133
    %v433 = vmul.f32 %v406, %v126
    %v434 = vmul.f32 %v406, %v127
    %v435 = vmul.f32 %v406, %v128
    %v436 = vmul.f32 %v406, %v129
    %v437 = vmul.f32 %v406, %v130
    %v438 = vmul.f32 %v406, %v131
    %v439 = vmul.f32 %v406, %v132
    %v440 = vmul.f32 %v406, %v133
    %v443 = vunpack.c.l.s4 1966171168
    %v444 = vunpack.c.0.s8 %v443
    %v445 = vlaneseq
    %v446 = vshrl.u32 %v445, 7
    %v447 = vsub.s32 %v444, %v446
    %v448 = vrot.slane %v124, %v447
    %v449 = vcombine.high %v448, %v448
    %v451 = vunpack.c.l.s4 1966171168
    %v452 = vunpack.c.0.s8 %v451
    %v453 = vlaneseq
    %v454 = vshrl.u32 %v453, 7
    %v455 = vsub.s32 %v452, %v454
    %v456 = vrot.slane %v448, %v455
    %v458 = vunpack.c.l.s4 1966171168
    %v459 = vunpack.c.0.s8 %v458
    %v460 = vlaneseq
    %v461 = vshrl.u32 %v460, 7
    %v462 = vsub.s32 %v459, %v461
    %v463 = vrot.slane %v449, %v462
    %v464 = vlaneseq
    %v465 = vshrl.u32 %v464, 7
    %v466 = vsub.s32 0, %v465
    %v467 = vrot.slane %v456, %v466
    %v468 = vlaneseq
    %v469 = vshrl.u32 %v468, 7
    %v470 = vsub.s32 0, %v469
    %v471 = vrot.slane %v463, %v470
    %474 = vmatprep.subr.mxu0 0.0
    %475 = vmatpush1.xpose.msra.mxu0 %v409
    %476 = vmatprep.subr.mxu0 0.0
    %477 = vmatpush1.xpose.msra.mxu0 %v410
    %478 = vmatprep.subr.mxu0 0.0
    %479 = vmatpush1.xpose.msra.mxu0 %v411
    %480 = vmatprep.subr.mxu0 0.0
    %481 = vmatpush1.xpose.msra.mxu0 %v412
    %482 = vmatprep.subr.mxu0 0.0
    %483 = vmatpush1.xpose.msra.mxu0 %v413
    %484 = vmatprep.subr.mxu0 0.0
    %485 = vmatpush1.xpose.msra.mxu0 %v414
    %486 = vmatprep.subr.mxu0 0.0
    %487 = vmatpush1.xpose.msra.mxu0 %v415
    %488 = vmatprep.subr.mxu0 0.0
    %489 = vmatpush1.xpose.msra.mxu0 %v416
    %490 = vmatprep.subr.mxu0 0.0
    %491 = vmatpush1.xpose.msra.mxu0 0.0
    %492 = vmatprep.subr.mxu0 0.0
    %493 = vmatpush1.xpose.msra.mxu0 0.0
    %494 = vmatprep.subr.mxu0 0.0
    %495 = vmatpush1.xpose.msra.mxu0 0.0
    %496 = vmatprep.subr.mxu0 0.0
    %497 = vmatpush1.xpose.msra.mxu0 0.0
    %498 = vmatprep.subr.mxu0 0.0
    %499 = vmatpush1.xpose.msra.mxu0 0.0
    %500 = vmatprep.subr.mxu0 0.0
    %501 = vmatpush1.xpose.msra.mxu0 0.0
    %502 = vmatprep.subr.mxu0 0.0
    %503 = vmatpush1.xpose.msra.mxu0 0.0
    %504 = vmatprep.subr.mxu0 0.0
    %505 = vmatpush1.xpose.msra.mxu0 0.0
    %506 = vmatprep.subr.mxu0 0.0
    %507 = vmatpush1.xpose.msra.mxu0 0.0
    %508 = vmatprep.subr.mxu0 0.0
    %509 = vmatpush1.xpose.msra.mxu0 0.0
    %510 = vmatprep.subr.mxu0 0.0
    %511 = vmatpush1.xpose.msra.mxu0 0.0
    %512 = vmatprep.subr.mxu0 0.0
    %513 = vmatpush1.xpose.msra.mxu0 0.0
    %514 = vmatprep.subr.mxu0 0.0
    %515 = vmatpush1.xpose.msra.mxu0 0.0
    %516 = vmatprep.subr.mxu0 0.0
    %517 = vmatpush1.xpose.msra.mxu0 0.0
    %518 = vmatprep.subr.mxu0 0.0
    %519 = vmatpush1.xpose.msra.mxu0 0.0
    %520 = vmatprep.subr.mxu0 0.0
    %521 = vmatpush1.xpose.msra.mxu0 0.0
    %522 = vmatprep.subr.mxu0 0.0
    %523 = vmatpush1.xpose.msra.mxu0 0.0
    %524 = vmatprep.subr.mxu0 0.0
    %525 = vmatpush1.xpose.msra.mxu0 0.0
    %526 = vmatprep.subr.mxu0 0.0
    %527 = vmatpush1.xpose.msra.mxu0 0.0
    %528 = vmatprep.subr.mxu0 0.0
    %529 = vmatpush1.xpose.msra.mxu0 0.0
    %530 = vmatprep.subr.mxu0 0.0
    %531 = vmatpush1.xpose.msra.mxu0 0.0
    %532 = vmatprep.subr.mxu0 0.0
    %533 = vmatpush1.xpose.msra.mxu0 0.0
    %534 = vmatprep.subr.mxu0 0.0
    %535 = vmatpush1.xpose.msra.mxu0 0.0
    %536 = vmatprep.subr.mxu0 0.0
    %537 = vmatpush1.xpose.msra.mxu0 0.0
    %538 = vmatprep.mubr.f32.mxu0 0.0
    %539 = vmatmul.mubr.f32.gmra.mrb[0].mxu0 %v360
    %v540 = vpop.f32.mrb[0].mxu0
    %v541 = vadd.f32 %v467, %v540
    %v542 = vpop.f32.mrb[0].mxu0
    %543 = vdwg.mxu0
    %544 = vmatprep.subr.mxu0 0.0
    %545 = vmatpush1.xpose.msra.mxu0 %v417
    %546 = vmatprep.subr.mxu0 0.0
    %547 = vmatpush1.xpose.msra.mxu0 %v418
    %548 = vmatprep.subr.mxu0 0.0
    %549 = vmatpush1.xpose.msra.mxu0 %v419
    %550 = vmatprep.subr.mxu0 0.0
    %551 = vmatpush1.xpose.msra.mxu0 %v420
    %552 = vmatprep.subr.mxu0 0.0
    %553 = vmatpush1.xpose.msra.mxu0 %v421
    %554 = vmatprep.subr.mxu0 0.0
    %555 = vmatpush1.xpose.msra.mxu0 %v422
    %556 = vmatprep.subr.mxu0 0.0
    %557 = vmatpush1.xpose.msra.mxu0 %v423
    %558 = vmatprep.subr.mxu0 0.0
    %559 = vmatpush1.xpose.msra.mxu0 %v424
    %560 = vmatprep.subr.mxu0 0.0
    %561 = vmatpush1.xpose.msra.mxu0 0.0
    %562 = vmatprep.subr.mxu0 0.0
    %563 = vmatpush1.xpose.msra.mxu0 0.0
    %564 = vmatprep.subr.mxu0 0.0
    %565 = vmatpush1.xpose.msra.mxu0 0.0
    %566 = vmatprep.subr.mxu0 0.0
    %567 = vmatpush1.xpose.msra.mxu0 0.0
    %568 = vmatprep.subr.mxu0 0.0
    %569 = vmatpush1.xpose.msra.mxu0 0.0
    %570 = vmatprep.subr.mxu0 0.0
    %571 = vmatpush1.xpose.msra.mxu0 0.0
    %572 = vmatprep.subr.mxu0 0.0
    %573 = vmatpush1.xpose.msra.mxu0 0.0
    %574 = vmatprep.subr.mxu0 0.0
    %575 = vmatpush1.xpose.msra.mxu0 0.0
    %576 = vmatprep.subr.mxu0 0.0
    %577 = vmatpush1.xpose.msra.mxu0 0.0
    %578 = vmatprep.subr.mxu0 0.0
    %579 = vmatpush1.xpose.msra.mxu0 0.0
    %580 = vmatprep.subr.mxu0 0.0
    %581 = vmatpush1.xpose.msra.mxu0 0.0
    %582 = vmatprep.subr.mxu0 0.0
    %583 = vmatpush1.xpose.msra.mxu0 0.0
    %584 = vmatprep.subr.mxu0 0.0
    %585 = vmatpush1.xpose.msra.mxu0 0.0
    %586 = vmatprep.subr.mxu0 0.0
    %587 = vmatpush1.xpose.msra.mxu0 0.0
    %588 = vmatprep.subr.mxu0 0.0
    %589 = vmatpush1.xpose.msra.mxu0 0.0
    %590 = vmatprep.subr.mxu0 0.0
    %591 = vmatpush1.xpose.msra.mxu0 0.0
    %592 = vmatprep.subr.mxu0 0.0
    %593 = vmatpush1.xpose.msra.mxu0 0.0
    %594 = vmatprep.subr.mxu0 0.0
    %595 = vmatpush1.xpose.msra.mxu0 0.0
    %596 = vmatprep.subr.mxu0 0.0
    %597 = vmatpush1.xpose.msra.mxu0 0.0
    %598 = vmatprep.subr.mxu0 0.0
    %599 = vmatpush1.xpose.msra.mxu0 0.0
    %600 = vmatprep.subr.mxu0 0.0
    %601 = vmatpush1.xpose.msra.mxu0 0.0
    %602 = vmatprep.subr.mxu0 0.0
    %603 = vmatpush1.xpose.msra.mxu0 0.0
    %604 = vmatprep.subr.mxu0 0.0
    %605 = vmatpush1.xpose.msra.mxu0 0.0
    %606 = vmatprep.subr.mxu0 0.0
    %607 = vmatpush1.xpose.msra.mxu0 0.0
    %608 = vmatprep.mubr.f32.mxu0 0.0
    %609 = vmatmul.mubr.f32.gmra.mrb[0].mxu0 %v364
    %v610 = vpop.f32.mrb[0].mxu0
    %v611 = vadd.f32 %v471, %v610
    %v612 = vpop.f32.mrb[0].mxu0
    %613 = vdwg.mxu0
    %vm614 = vcmask 523264
    %v615 = vsel %vm614, %v541, -inf
    %616 = vmax.xlane.f32.xlu0 %v615
    %v617 = vpop.xlane.xlu0 %616
    %v618 = vsel %vm614, %v611, -inf
    %619 = vmax.xlane.f32.xlu0 %v618
    %v620 = vpop.xlane.xlu0 %619
    %v621 = vsub.f32 %v541, %v617
    %v622 = vsub.f32 %v611, %v620
    %v623 = vmul.f32 %v621, 1.442695
    %v624 = vpow.pop %v623
    %v625 = vmul.f32 %v622, 1.442695
    %v626 = vpow.pop %v625
    %v628 = vsel %vm614, %v624, 0
    %v631 = vsel %vm614, %v626, 0
    %633 = vmatprep.subr.mxu0 0.0
    %634 = vmatpush1.msra.mxu0 %v126
    %635 = vmatprep.subr.mxu0 0.0
    %636 = vmatpush1.msra.mxu0 %v127
    %637 = vmatprep.subr.mxu0 0.0
    %638 = vmatpush1.msra.mxu0 %v128
    %639 = vmatprep.subr.mxu0 0.0
    %640 = vmatpush1.msra.mxu0 %v129
    %641 = vmatprep.subr.mxu0 0.0
    %642 = vmatpush1.msra.mxu0 %v130
    %643 = vmatprep.subr.mxu0 0.0
    %644 = vmatpush1.msra.mxu0 %v131
    %645 = vmatprep.subr.mxu0 0.0
    %646 = vmatpush1.msra.mxu0 %v132
    %647 = vmatprep.subr.mxu0 0.0
    %648 = vmatpush1.msra.mxu0 %v133
    %649 = vmatprep.subr.mxu0 0.0
    %650 = vmatpush1.msra.mxu0 0.0
    %651 = vmatprep.subr.mxu0 0.0
    %652 = vmatpush1.msra.mxu0 0.0
    %653 = vmatprep.subr.mxu0 0.0
    %654 = vmatpush1.msra.mxu0 0.0
    %655 = vmatprep.subr.mxu0 0.0
    %656 = vmatpush1.msra.mxu0 0.0
    %657 = vmatprep.subr.mxu0 0.0
    %658 = vmatpush1.msra.mxu0 0.0
    %659 = vmatprep.subr.mxu0 0.0
    %660 = vmatpush1.msra.mxu0 0.0
    %661 = vmatprep.subr.mxu0 0.0
    %662 = vmatpush1.msra.mxu0 0.0
    %663 = vmatprep.subr.mxu0 0.0
    %664 = vmatpush1.msra.mxu0 0.0
    %665 = vmatprep.subr.mxu0 0.0
    %666 = vmatpush1.msra.mxu0 0.0
    %667 = vmatprep.subr.mxu0 0.0
    %668 = vmatpush1.msra.mxu0 0.0
    %669 = vmatprep.subr.mxu0 0.0
    %670 = vmatpush1.msra.mxu0 0.0
    %671 = vmatprep.subr.mxu0 0.0
    %672 = vmatpush1.msra.mxu0 0.0
    %673 = vmatprep.subr.mxu0 0.0
    %674 = vmatpush1.msra.mxu0 0.0
    %675 = vmatprep.subr.mxu0 0.0
    %676 = vmatpush1.msra.mxu0 0.0
    %677 = vmatprep.subr.mxu0 0.0
    %678 = vmatpush1.msra.mxu0 0.0
    %679 = vmatprep.subr.mxu0 0.0
    %680 = vmatpush1.msra.mxu0 0.0
    %681 = vmatprep.subr.mxu0 0.0
    %682 = vmatpush1.msra.mxu0 0.0
    %683 = vmatprep.subr.mxu0 0.0
    %684 = vmatpush1.msra.mxu0 0.0
    %685 = vmatprep.subr.mxu0 0.0
    %686 = vmatpush1.msra.mxu0 0.0
    %687 = vmatprep.subr.mxu0 0.0
    %688 = vmatpush1.msra.mxu0 0.0
    %689 = vmatprep.subr.mxu0 0.0
    %690 = vmatpush1.msra.mxu0 0.0
    %691 = vmatprep.subr.mxu0 0.0
    %692 = vmatpush1.msra.mxu0 0.0
    %693 = vmatprep.subr.mxu0 0.0
    %694 = vmatpush1.msra.mxu0 0.0
    %695 = vmatprep.subr.mxu0 0.0
    %696 = vmatpush1.msra.mxu0 0.0
    %697 = vmatprep.mubr.f32.mxu0 0.0
    %698 = vmatmul.mubr.f32.gmra.mrb[0].mxu0 %v628
    %v699 = vpop.f32.mrb[0].mxu0
    %v700 = vadd.f32 0.0, %v699
    %v701 = vpop.f32.mrb[0].mxu0
    %702 = vmatprep.mubr.f32.mxu0 0.0
    %703 = vmatmul.mubr.f32.gmra.mrb[0].mxu0 %v631
    %v704 = vpop.f32.mrb[0].mxu0
    %v705 = vadd.f32 0.0, %v704
    %v706 = vpop.f32.mrb[0].mxu0
    %707 = vdwg.mxu0
    %708 = vmatprep.subr.mxu0 0.0
    %709 = vmatpush1.msra.mxu0 %v425
    %710 = vmatprep.subr.mxu0 0.0
    %711 = vmatpush1.msra.mxu0 %v426
    %712 = vmatprep.subr.mxu0 0.0
    %713 = vmatpush1.msra.mxu0 %v427
    %714 = vmatprep.subr.mxu0 0.0
    %715 = vmatpush1.msra.mxu0 %v428
    %716 = vmatprep.subr.mxu0 0.0
    %717 = vmatpush1.msra.mxu0 %v429
    %718 = vmatprep.subr.mxu0 0.0
    %719 = vmatpush1.msra.mxu0 %v430
    %720 = vmatprep.subr.mxu0 0.0
    %721 = vmatpush1.msra.mxu0 %v431
    %722 = vmatprep.subr.mxu0 0.0
    %723 = vmatpush1.msra.mxu0 %v432
    %724 = vmatprep.subr.mxu0 0.0
    %725 = vmatpush1.msra.mxu0 0.0
    %726 = vmatprep.subr.mxu0 0.0
    %727 = vmatpush1.msra.mxu0 0.0
    %728 = vmatprep.subr.mxu0 0.0
    %729 = vmatpush1.msra.mxu0 0.0
    %730 = vmatprep.subr.mxu0 0.0
    %731 = vmatpush1.msra.mxu0 0.0
    %732 = vmatprep.subr.mxu0 0.0
    %733 = vmatpush1.msra.mxu0 0.0
    %734 = vmatprep.subr.mxu0 0.0
    %735 = vmatpush1.msra.mxu0 0.0
    %736 = vmatprep.subr.mxu0 0.0
    %737 = vmatpush1.msra.mxu0 0.0
    %738 = vmatprep.subr.mxu0 0.0
    %739 = vmatpush1.msra.mxu0 0.0
    %740 = vmatprep.subr.mxu0 0.0
    %741 = vmatpush1.msra.mxu0 0.0
    %742 = vmatprep.subr.mxu0 0.0
    %743 = vmatpush1.msra.mxu0 0.0
    %744 = vmatprep.subr.mxu0 0.0
    %745 = vmatpush1.msra.mxu0 0.0
    %746 = vmatprep.subr.mxu0 0.0
    %747 = vmatpush1.msra.mxu0 0.0
    %748 = vmatprep.subr.mxu0 0.0
    %749 = vmatpush1.msra.mxu0 0.0
    %750 = vmatprep.subr.mxu0 0.0
    %751 = vmatpush1.msra.mxu0 0.0
    %752 = vmatprep.subr.mxu0 0.0
    %753 = vmatpush1.msra.mxu0 0.0
    %754 = vmatprep.subr.mxu0 0.0
    %755 = vmatpush1.msra.mxu0 0.0
    %756 = vmatprep.subr.mxu0 0.0
    %757 = vmatpush1.msra.mxu0 0.0
    %758 = vmatprep.subr.mxu0 0.0
    %759 = vmatpush1.msra.mxu0 0.0
    %760 = vmatprep.subr.mxu0 0.0
    %761 = vmatpush1.msra.mxu0 0.0
    %762 = vmatprep.subr.mxu0 0.0
    %763 = vmatpush1.msra.mxu0 0.0
    %764 = vmatprep.subr.mxu0 0.0
    %765 = vmatpush1.msra.mxu0 0.0
    %766 = vmatprep.subr.mxu0 0.0
    %767 = vmatpush1.msra.mxu0 0.0
    %768 = vmatprep.subr.mxu0 0.0
    %769 = vmatpush1.msra.mxu0 0.0
    %770 = vmatprep.subr.mxu0 0.0
    %771 = vmatpush1.msra.mxu0 0.0
    %772 = vmatprep.mubr.f32.mxu0 0.0
    %773 = vmatmul.mubr.f32.gmra.mrb[0].mxu0 %v628
    %v774 = vpop.f32.mrb[0].mxu0
    %v775 = vadd.f32 0.0, %v774
    %v776 = vpop.f32.mrb[0].mxu0
    %777 = vdwg.mxu0
    %778 = vmatprep.subr.mxu0 0.0
    %779 = vmatpush1.msra.mxu0 %v433
    %780 = vmatprep.subr.mxu0 0.0
    %781 = vmatpush1.msra.mxu0 %v434
    %782 = vmatprep.subr.mxu0 0.0
    %783 = vmatpush1.msra.mxu0 %v435
    %784 = vmatprep.subr.mxu0 0.0
    %785 = vmatpush1.msra.mxu0 %v436
    %786 = vmatprep.subr.mxu0 0.0
    %787 = vmatpush1.msra.mxu0 %v437
    %788 = vmatprep.subr.mxu0 0.0
    %789 = vmatpush1.msra.mxu0 %v438
    %790 = vmatprep.subr.mxu0 0.0
    %791 = vmatpush1.msra.mxu0 %v439
    %792 = vmatprep.subr.mxu0 0.0
    %793 = vmatpush1.msra.mxu0 %v440
    %794 = vmatprep.subr.mxu0 0.0
    %795 = vmatpush1.msra.mxu0 0.0
    %796 = vmatprep.subr.mxu0 0.0
    %797 = vmatpush1.msra.mxu0 0.0
    %798 = vmatprep.subr.mxu0 0.0
    %799 = vmatpush1.msra.mxu0 0.0
    %800 = vmatprep.subr.mxu0 0.0
    %801 = vmatpush1.msra.mxu0 0.0
    %802 = vmatprep.subr.mxu0 0.0
    %803 = vmatpush1.msra.mxu0 0.0
    %804 = vmatprep.subr.mxu0 0.0
    %805 = vmatpush1.msra.mxu0 0.0
    %806 = vmatprep.subr.mxu0 0.0
    %807 = vmatpush1.msra.mxu0 0.0
    %808 = vmatprep.subr.mxu0 0.0
    %809 = vmatpush1.msra.mxu0 0.0
    %810 = vmatprep.subr.mxu0 0.0
    %811 = vmatpush1.msra.mxu0 0.0
    %812 = vmatprep.subr.mxu0 0.0
    %813 = vmatpush1.msra.mxu0 0.0
    %814 = vmatprep.subr.mxu0 0.0
    %815 = vmatpush1.msra.mxu0 0.0
    %816 = vmatprep.subr.mxu0 0.0
    %817 = vmatpush1.msra.mxu0 0.0
    %818 = vmatprep.subr.mxu0 0.0
    %819 = vmatpush1.msra.mxu0 0.0
    %820 = vmatprep.subr.mxu0 0.0
    %821 = vmatpush1.msra.mxu0 0.0
    %822 = vmatprep.subr.mxu0 0.0
    %823 = vmatpush1.msra.mxu0 0.0
    %824 = vmatprep.subr.mxu0 0.0
    %825 = vmatpush1.msra.mxu0 0.0
    %826 = vmatprep.subr.mxu0 0.0
    %827 = vmatpush1.msra.mxu0 0.0
    %828 = vmatprep.subr.mxu0 0.0
    %829 = vmatpush1.msra.mxu0 0.0
    %830 = vmatprep.subr.mxu0 0.0
    %831 = vmatpush1.msra.mxu0 0.0
    %832 = vmatprep.subr.mxu0 0.0
    %833 = vmatpush1.msra.mxu0 0.0
    %834 = vmatprep.subr.mxu0 0.0
    %835 = vmatpush1.msra.mxu0 0.0
    %836 = vmatprep.subr.mxu0 0.0
    %837 = vmatpush1.msra.mxu0 0.0
    %838 = vmatprep.subr.mxu0 0.0
    %839 = vmatpush1.msra.mxu0 0.0
    %840 = vmatprep.subr.mxu0 0.0
    %841 = vmatpush1.msra.mxu0 0.0
    %842 = vmatprep.mubr.f32.mxu0 0.0
    %843 = vmatmul.mubr.f32.gmra.mrb[0].mxu0 %v631
    %v844 = vpop.f32.mrb[0].mxu0
    %v845 = vadd.f32 0.0, %v844
    %v846 = vpop.f32.mrb[0].mxu0
    %847 = vdwg.mxu0
    %v848 = vrcp.pop %v700
    %v849 = vmul.f32 %v775, %v848
    %v850 = vrcp.pop %v705
    %v851 = vmul.f32 %v845, %v850
    %v852 = vpack.c.bf16 %v851, %v849
    %v853 = vld [vmem:[#allocation8] sm:$0xf]
    %v854 = vld [vmem:[#allocation8 + $0x4] sm:$0xf]
    %v855 = vld [vmem:[#allocation8 + $0x8] sm:$0xf]
    %v856 = vld [vmem:[#allocation8 + $0xc] sm:$0xf]
    %v857 = vld [vmem:[#allocation8 + $0x10] sm:$0xf]
    %v858 = vld [vmem:[#allocation8 + $0x14] sm:$0xf]
    %v859 = vld [vmem:[#allocation8 + $0x18] sm:$0xf]
    %v860 = vld [vmem:[#allocation8 + $0x1c] sm:$0xf]
    %v861 = vld [vmem:[#allocation8 + $0x20] sm:$0xf]
    %v862 = vld [vmem:[#allocation8 + $0x24] sm:$0xf]
    %v863 = vld [vmem:[#allocation8 + $0x28] sm:$0xf]
    %v864 = vld [vmem:[#allocation8 + $0x2c] sm:$0xf]
    %v865 = vld [vmem:[#allocation8 + $0x30] sm:$0xf]
    %v866 = vld [vmem:[#allocation8 + $0x34] sm:$0xf]
    %v867 = vld [vmem:[#allocation8 + $0x38] sm:$0xf]
    %v868 = vld [vmem:[#allocation8 + $0x3c] sm:$0xf]
    %v869 = vlaneseq
    %v870 = vshrl.u32 %v869, 7
    %v871 = vsub.s32 2, %v870
    %v872 = vrot.slane %v134, %v871
    %v889 = vunpack.c.l.b16 %v853
    %v890 = vunpack.c.l.b16 %v854
    %v891 = vunpack.c.l.b16 %v855
    %v892 = vunpack.c.l.b16 %v856
    %v893 = vunpack.c.l.b16 %v857
    %v894 = vunpack.c.l.b16 %v858
    %v895 = vunpack.c.l.b16 %v859
    %v896 = vunpack.c.l.b16 %v860
    %v897 = vunpack.c.l.b16 %v861
    %v898 = vunpack.c.l.b16 %v862
    %v899 = vunpack.c.l.b16 %v863
    %v900 = vunpack.c.l.b16 %v864
    %v901 = vunpack.c.l.b16 %v865
    %v902 = vunpack.c.l.b16 %v866
    %v903 = vunpack.c.l.b16 %v867
    %v904 = vunpack.c.l.b16 %v868
    %v905 = vpack.c.b16 %v890, %v889
    %v906 = vpack.c.b16 %v892, %v891
    %v907 = vpack.c.b16 %v894, %v893
    %v908 = vpack.c.b16 %v896, %v895
    %v909 = vpack.c.b16 %v898, %v897
    %v910 = vpack.c.b16 %v900, %v899
    %v911 = vpack.c.b16 %v902, %v901
    %v912 = vpack.c.b16 %v904, %v903
    %921 = vmatprep.subr.bf16.mxu0 0
    %922 = vmatpush1.bf16.msra.mxu0 %v905
    %923 = vmatprep.subr.bf16.mxu0 0
    %924 = vmatpush1.bf16.msra.mxu0 %v906
    %925 = vmatprep.subr.bf16.mxu0 0
    %926 = vmatpush1.bf16.msra.mxu0 %v907
    %927 = vmatprep.subr.bf16.mxu0 0
    %928 = vmatpush1.bf16.msra.mxu0 %v908
    %929 = vmatprep.subr.bf16.mxu0 0
    %930 = vmatpush1.bf16.msra.mxu0 %v909
    %931 = vmatprep.subr.bf16.mxu0 0
    %932 = vmatpush1.bf16.msra.mxu0 %v910
    %933 = vmatprep.subr.bf16.mxu0 0
    %934 = vmatpush1.bf16.msra.mxu0 %v911
    %935 = vmatprep.subr.bf16.mxu0 0
    %936 = vmatpush1.bf16.msra.mxu0 %v912
    %937 = vmatprep.subr.bf16.mxu0 0
    %938 = vmatpush1.bf16.msra.mxu0 0
    %939 = vmatprep.subr.bf16.mxu0 0
    %940 = vmatpush1.bf16.msra.mxu0 0
    %941 = vmatprep.subr.bf16.mxu0 0
    %942 = vmatpush1.bf16.msra.mxu0 0
    %943 = vmatprep.subr.bf16.mxu0 0
    %944 = vmatpush1.bf16.msra.mxu0 0
    %945 = vmatprep.subr.bf16.mxu0 0
    %946 = vmatpush1.bf16.msra.mxu0 0
    %947 = vmatprep.subr.bf16.mxu0 0
    %948 = vmatpush1.bf16.msra.mxu0 0
    %949 = vmatprep.subr.bf16.mxu0 0
    %950 = vmatpush1.bf16.msra.mxu0 0
    %951 = vmatprep.subr.bf16.mxu0 0
    %952 = vmatpush1.bf16.msra.mxu0 0
    %953 = vmatprep.mubr.bf16.mxu0 0
    %954 = vmatmul.mubr.bf16.gmra.mrb[0].mxu0 %v852
    %v955 = vpop.f32.mrb[0].mxu0
    %v956 = vadd.f32 %v872, %v955
    %v957 = vpop.f32.mrb[0].mxu0
    %v958 = vpop.f32.mrb[0].mxu0
    %v959 = vadd.f32 %v872, %v958
    %v960 = vpop.f32.mrb[0].mxu0
    %961 = vdwg.mxu0
    %v962 = vadd.f32 %v145, %v956
    %v963 = vadd.f32 %v146, %v959
    %964 = vadd.xlane.f32.xlu0 %v962
    %v965 = vpop.xlane.xlu0 %964
    %966 = vadd.xlane.f32.xlu0 %v963
    %v967 = vpop.xlane.xlu0 %966
    %v968 = vrcp.pop 128.0
    %v969 = vmul.f32 %v965, %v968
    %v970 = vmul.f32 %v967, %v968
    %v971 = vsub.f32 %v962, %v969
    %v972 = vsub.f32 %v963, %v970
    %v973 = vmul.f32 %v971, %v971
    %v974 = vmul.f32 %v972, %v972
    %975 = vadd.xlane.f32.xlu0 %v973
    %v976 = vpop.xlane.xlu0 %975
    %977 = vadd.xlane.f32.xlu0 %v974
    %v978 = vpop.xlane.xlu0 %977
    %v979 = vmul.f32 %v976, %v968
    %v980 = vmul.f32 %v978, %v968
    %v981 = vadd.f32 %v979, 1e-05
    %v982 = vadd.f32 %v980, 1e-05
    %v983 = vrsqrt.pop %v981
    %v984 = vrsqrt.pop %v982
    %v985 = vmul.f32 %v971, %v983
    %v986 = vmul.f32 %v972, %v984
    %v987 = vlaneseq
    %v988 = vshrl.u32 %v987, 7
    %v989 = vsub.s32 3, %v988
    %v990 = vrot.slane %v134, %v989
    %v991 = vmul.f32 %v985, %v990
    %v992 = vmul.f32 %v986, %v990
    %v993 = vlaneseq
    %v994 = vshrl.u32 %v993, 7
    %v995 = vsub.s32 4, %v994
    %v996 = vrot.slane %v134, %v995
    %v997 = vadd.f32 %v991, %v996
    %v998 = vadd.f32 %v992, %v996
    %v999 = vpack.c.bf16 %v998, %v997
    %v1000 = vld [vmem:[#allocation10] sm:$0xff]
    %v1001 = vld [vmem:[#allocation10 + $0x8] sm:$0xff]
    %v1002 = vld [vmem:[#allocation10 + $0x10] sm:$0xff]
    %v1003 = vld [vmem:[#allocation10 + $0x18] sm:$0xff]
    %v1004 = vld [vmem:[#allocation10 + $0x20] sm:$0xff]
    %v1005 = vld [vmem:[#allocation10 + $0x28] sm:$0xff]
    %v1006 = vld [vmem:[#allocation10 + $0x30] sm:$0xff]
    %v1007 = vld [vmem:[#allocation10 + $0x38] sm:$0xff]
    %v1008 = vld [vmem:[#allocation10 + $0x40] sm:$0xff]
    %v1009 = vld [vmem:[#allocation10 + $0x48] sm:$0xff]
    %v1010 = vld [vmem:[#allocation10 + $0x50] sm:$0xff]
    %v1011 = vld [vmem:[#allocation10 + $0x58] sm:$0xff]
    %v1012 = vld [vmem:[#allocation10 + $0x60] sm:$0xff]
    %v1013 = vld [vmem:[#allocation10 + $0x68] sm:$0xff]
    %v1014 = vld [vmem:[#allocation10 + $0x70] sm:$0xff]
    %v1015 = vld [vmem:[#allocation10 + $0x78] sm:$0xff]
    %v1016 = vld [vmem:[%s6] sm:$0x3]
    %v1018 = vlaneseq
    %v1019 = vshrl.u32 %v1018, 7
    %v1020 = vsub.s32 0, %v1019
    %v1021 = vrot.slane %v1016, %v1020
    %v1022 = vlaneseq
    %v1023 = vshrl.u32 %v1022, 7
    %v1024 = vsub.s32 1, %v1023
    %v1025 = vrot.slane %v1016, %v1024
    %v1044 = vunpack.c.l.b16 %v1000
    %v1045 = vunpack.c.h.b16 %v1000
    %v1046 = vunpack.c.l.b16 %v1001
    %v1047 = vunpack.c.h.b16 %v1001
    %v1048 = vunpack.c.l.b16 %v1002
    %v1049 = vunpack.c.h.b16 %v1002
    %v1050 = vunpack.c.l.b16 %v1003
    %v1051 = vunpack.c.h.b16 %v1003
    %v1052 = vunpack.c.l.b16 %v1004
    %v1053 = vunpack.c.h.b16 %v1004
    %v1054 = vunpack.c.l.b16 %v1005
    %v1055 = vunpack.c.h.b16 %v1005
    %v1056 = vunpack.c.l.b16 %v1006
    %v1057 = vunpack.c.h.b16 %v1006
    %v1058 = vunpack.c.l.b16 %v1007
    %v1059 = vunpack.c.h.b16 %v1007
    %v1060 = vunpack.c.l.b16 %v1008
    %v1061 = vunpack.c.h.b16 %v1008
    %v1062 = vunpack.c.l.b16 %v1009
    %v1063 = vunpack.c.h.b16 %v1009
    %v1064 = vunpack.c.l.b16 %v1010
    %v1065 = vunpack.c.h.b16 %v1010
    %v1066 = vunpack.c.l.b16 %v1011
    %v1067 = vunpack.c.h.b16 %v1011
    %v1068 = vunpack.c.l.b16 %v1012
    %v1069 = vunpack.c.h.b16 %v1012
    %v1070 = vunpack.c.l.b16 %v1013
    %v1071 = vunpack.c.h.b16 %v1013
    %v1072 = vunpack.c.l.b16 %v1014
    %v1073 = vunpack.c.h.b16 %v1014
    %v1074 = vunpack.c.l.b16 %v1015
    %v1075 = vunpack.c.h.b16 %v1015
    %v1076 = vpack.c.b16 %v1046, %v1044
    %v1077 = vpack.c.b16 %v1047, %v1045
    %v1078 = vpack.c.b16 %v1050, %v1048
    %v1079 = vpack.c.b16 %v1051, %v1049
    %v1080 = vpack.c.b16 %v1054, %v1052
    %v1081 = vpack.c.b16 %v1055, %v1053
    %v1082 = vpack.c.b16 %v1058, %v1056
    %v1083 = vpack.c.b16 %v1059, %v1057
    %v1084 = vpack.c.b16 %v1062, %v1060
    %v1085 = vpack.c.b16 %v1063, %v1061
    %v1086 = vpack.c.b16 %v1066, %v1064
    %v1087 = vpack.c.b16 %v1067, %v1065
    %v1088 = vpack.c.b16 %v1070, %v1068
    %v1089 = vpack.c.b16 %v1071, %v1069
    %v1090 = vpack.c.b16 %v1074, %v1072
    %v1091 = vpack.c.b16 %v1075, %v1073
    %1108 = vmatprep.subr.bf16.mxu0 %v1077
    %1109 = vmatpush1.bf16.msra.mxu0 %v1076
    %1110 = vmatprep.subr.bf16.mxu0 %v1079
    %1111 = vmatpush1.bf16.msra.mxu0 %v1078
    %1112 = vmatprep.subr.bf16.mxu0 %v1081
    %1113 = vmatpush1.bf16.msra.mxu0 %v1080
    %1114 = vmatprep.subr.bf16.mxu0 %v1083
    %1115 = vmatpush1.bf16.msra.mxu0 %v1082
    %1116 = vmatprep.subr.bf16.mxu0 %v1085
    %1117 = vmatpush1.bf16.msra.mxu0 %v1084
    %1118 = vmatprep.subr.bf16.mxu0 %v1087
    %1119 = vmatpush1.bf16.msra.mxu0 %v1086
    %1120 = vmatprep.subr.bf16.mxu0 %v1089
    %1121 = vmatpush1.bf16.msra.mxu0 %v1088
    %1122 = vmatprep.subr.bf16.mxu0 %v1091
    %1123 = vmatpush1.bf16.msra.mxu0 %v1090
    %1124 = vmatprep.subr.bf16.mxu0 0
    %1125 = vmatpush1.bf16.msra.mxu0 0
    %1126 = vmatprep.subr.bf16.mxu0 0
    %1127 = vmatpush1.bf16.msra.mxu0 0
    %1128 = vmatprep.subr.bf16.mxu0 0
    %1129 = vmatpush1.bf16.msra.mxu0 0
    %1130 = vmatprep.subr.bf16.mxu0 0
    %1131 = vmatpush1.bf16.msra.mxu0 0
    %1132 = vmatprep.subr.bf16.mxu0 0
    %1133 = vmatpush1.bf16.msra.mxu0 0
    %1134 = vmatprep.subr.bf16.mxu0 0
    %1135 = vmatpush1.bf16.msra.mxu0 0
    %1136 = vmatprep.subr.bf16.mxu0 0
    %1137 = vmatpush1.bf16.msra.mxu0 0
    %1138 = vmatprep.subr.bf16.mxu0 0
    %1139 = vmatpush1.bf16.msra.mxu0 0
    %1140 = vmatprep.mubr.bf16.mxu0 0
    %1141 = vmatmul.mubr.bf16.gmra.mrb[0].mxu0 %v999
    %v1142 = vpop.f32.mrb[0].mxu0
    %v1143 = vadd.f32 %v1021, %v1142
    %v1144 = vpop.f32.mrb[0].mxu0
    %v1145 = vadd.f32 %v1025, %v1144
    %v1146 = vpop.f32.mrb[0].mxu0
    %v1147 = vadd.f32 %v1021, %v1146
    %v1148 = vpop.f32.mrb[0].mxu0
    %v1149 = vadd.f32 %v1025, %v1148
    %1150 = vdwg.mxu0
    %v1151 = vmax.f32 %v1143, 0.0
    %v1152 = vmax.f32 %v1145, 0.0
    %v1153 = vmax.f32 %v1147, 0.0
    %v1154 = vmax.f32 %v1149, 0.0
    %v1155 = vpack.c.bf16 %v1153, %v1151
    %v1156 = vpack.c.bf16 %v1154, %v1152
    %v1157 = vld [vmem:[#allocation11] sm:$0xf]
    %v1158 = vld [vmem:[#allocation11 + $0x4] sm:$0xf]
    %v1159 = vld [vmem:[#allocation11 + $0x8] sm:$0xf]
    %v1160 = vld [vmem:[#allocation11 + $0xc] sm:$0xf]
    %v1161 = vld [vmem:[#allocation11 + $0x10] sm:$0xf]
    %v1162 = vld [vmem:[#allocation11 + $0x14] sm:$0xf]
    %v1163 = vld [vmem:[#allocation11 + $0x18] sm:$0xf]
    %v1164 = vld [vmem:[#allocation11 + $0x1c] sm:$0xf]
    %v1165 = vld [vmem:[#allocation11 + $0x20] sm:$0xf]
    %v1166 = vld [vmem:[#allocation11 + $0x24] sm:$0xf]
    %v1167 = vld [vmem:[#allocation11 + $0x28] sm:$0xf]
    %v1168 = vld [vmem:[#allocation11 + $0x2c] sm:$0xf]
    %v1169 = vld [vmem:[#allocation11 + $0x30] sm:$0xf]
    %v1170 = vld [vmem:[#allocation11 + $0x34] sm:$0xf]
    %v1171 = vld [vmem:[#allocation11 + $0x38] sm:$0xf]
    %v1172 = vld [vmem:[#allocation11 + $0x3c] sm:$0xf]
    %v1173 = vld [vmem:[#allocation11 + $0x40] sm:$0xf]
    %v1174 = vld [vmem:[#allocation11 + $0x44] sm:$0xf]
    %v1175 = vld [vmem:[#allocation11 + $0x48] sm:$0xf]
    %v1176 = vld [vmem:[#allocation11 + $0x4c] sm:$0xf]
    %v1177 = vld [vmem:[#allocation11 + $0x50] sm:$0xf]
    %v1178 = vld [vmem:[#allocation11 + $0x54] sm:$0xf]
    %v1179 = vld [vmem:[#allocation11 + $0x58] sm:$0xf]
    %v1180 = vld [vmem:[#allocation11 + $0x5c] sm:$0xf]
    %v1181 = vld [vmem:[#allocation11 + $0x60] sm:$0xf]
    %v1182 = vld [vmem:[#allocation11 + $0x64] sm:$0xf]
    %v1183 = vld [vmem:[#allocation11 + $0x68] sm:$0xf]
    %v1184 = vld [vmem:[#allocation11 + $0x6c] sm:$0xf]
    %v1185 = vld [vmem:[#allocation11 + $0x70] sm:$0xf]
    %v1186 = vld [vmem:[#allocation11 + $0x74] sm:$0xf]
    %v1187 = vld [vmem:[#allocation11 + $0x78] sm:$0xf]
    %v1188 = vld [vmem:[#allocation11 + $0x7c] sm:$0xf]
    %v1189 = vlaneseq
    %v1190 = vshrl.u32 %v1189, 7
    %v1191 = vsub.s32 5, %v1190
    %v1192 = vrot.slane %v134, %v1191
    %v1225 = vunpack.c.l.b16 %v1157
    %v1226 = vunpack.c.l.b16 %v1158
    %v1227 = vunpack.c.l.b16 %v1159
    %v1228 = vunpack.c.l.b16 %v1160
    %v1229 = vunpack.c.l.b16 %v1161
    %v1230 = vunpack.c.l.b16 %v1162
    %v1231 = vunpack.c.l.b16 %v1163
    %v1232 = vunpack.c.l.b16 %v1164
    %v1233 = vunpack.c.l.b16 %v1165
    %v1234 = vunpack.c.l.b16 %v1166
    %v1235 = vunpack.c.l.b16 %v1167
    %v1236 = vunpack.c.l.b16 %v1168
    %v1237 = vunpack.c.l.b16 %v1169
    %v1238 = vunpack.c.l.b16 %v1170
    %v1239 = vunpack.c.l.b16 %v1171
    %v1240 = vunpack.c.l.b16 %v1172
    %v1241 = vunpack.c.l.b16 %v1173
    %v1242 = vunpack.c.l.b16 %v1174
    %v1243 = vunpack.c.l.b16 %v1175
    %v1244 = vunpack.c.l.b16 %v1176
    %v1245 = vunpack.c.l.b16 %v1177
    %v1246 = vunpack.c.l.b16 %v1178
    %v1247 = vunpack.c.l.b16 %v1179
    %v1248 = vunpack.c.l.b16 %v1180
    %v1249 = vunpack.c.l.b16 %v1181
    %v1250 = vunpack.c.l.b16 %v1182
    %v1251 = vunpack.c.l.b16 %v1183
    %v1252 = vunpack.c.l.b16 %v1184
    %v1253 = vunpack.c.l.b16 %v1185
    %v1254 = vunpack.c.l.b16 %v1186
    %v1255 = vunpack.c.l.b16 %v1187
    %v1256 = vunpack.c.l.b16 %v1188
    %v1257 = vpack.c.b16 %v1226, %v1225
    %v1258 = vpack.c.b16 %v1228, %v1227
    %v1259 = vpack.c.b16 %v1230, %v1229
    %v1260 = vpack.c.b16 %v1232, %v1231
    %v1261 = vpack.c.b16 %v1234, %v1233
    %v1262 = vpack.c.b16 %v1236, %v1235
    %v1263 = vpack.c.b16 %v1238, %v1237
    %v1264 = vpack.c.b16 %v1240, %v1239
    %v1265 = vpack.c.b16 %v1242, %v1241
    %v1266 = vpack.c.b16 %v1244, %v1243
    %v1267 = vpack.c.b16 %v1246, %v1245
    %v1268 = vpack.c.b16 %v1248, %v1247
    %v1269 = vpack.c.b16 %v1250, %v1249
    %v1270 = vpack.c.b16 %v1252, %v1251
    %v1271 = vpack.c.b16 %v1254, %v1253
    %v1272 = vpack.c.b16 %v1256, %v1255
    %1289 = vmatprep.subr.bf16.mxu0 0
    %1290 = vmatpush1.bf16.msra.mxu0 %v1257
    %1291 = vmatprep.subr.bf16.mxu0 0
    %1292 = vmatpush1.bf16.msra.mxu0 %v1258
    %1293 = vmatprep.subr.bf16.mxu0 0
    %1294 = vmatpush1.bf16.msra.mxu0 %v1259
    %1295 = vmatprep.subr.bf16.mxu0 0
    %1296 = vmatpush1.bf16.msra.mxu0 %v1260
    %1297 = vmatprep.subr.bf16.mxu0 0
    %1298 = vmatpush1.bf16.msra.mxu0 %v1261
    %1299 = vmatprep.subr.bf16.mxu0 0
    %1300 = vmatpush1.bf16.msra.mxu0 %v1262
    %1301 = vmatprep.subr.bf16.mxu0 0
    %1302 = vmatpush1.bf16.msra.mxu0 %v1263
    %1303 = vmatprep.subr.bf16.mxu0 0
    %1304 = vmatpush1.bf16.msra.mxu0 %v1264
    %1305 = vmatprep.subr.bf16.mxu0 0
    %1306 = vmatpush1.bf16.msra.mxu0 %v1265
    %1307 = vmatprep.subr.bf16.mxu0 0
    %1308 = vmatpush1.bf16.msra.mxu0 %v1266
    %1309 = vmatprep.subr.bf16.mxu0 0
    %1310 = vmatpush1.bf16.msra.mxu0 %v1267
    %1311 = vmatprep.subr.bf16.mxu0 0
    %1312 = vmatpush1.bf16.msra.mxu0 %v1268
    %1313 = vmatprep.subr.bf16.mxu0 0
    %1314 = vmatpush1.bf16.msra.mxu0 %v1269
    %1315 = vmatprep.subr.bf16.mxu0 0
    %1316 = vmatpush1.bf16.msra.mxu0 %v1270
    %1317 = vmatprep.subr.bf16.mxu0 0
    %1318 = vmatpush1.bf16.msra.mxu0 %v1271
    %1319 = vmatprep.subr.bf16.mxu0 0
    %1320 = vmatpush1.bf16.msra.mxu0 %v1272
    %1321 = vmatprep.mubr.bf16.mxu0 %v1156
    %1322 = vmatmul.mubr.bf16.gmra.mrb[0].mxu0 %v1155
    %v1323 = vpop.f32.mrb[0].mxu0
    %v1324 = vadd.f32 %v1192, %v1323
    %v1325 = vpop.f32.mrb[0].mxu0
    %v1326 = vpop.f32.mrb[0].mxu0
    %v1327 = vadd.f32 %v1192, %v1326
    %v1328 = vpop.f32.mrb[0].mxu0
    %1329 = vdwg.mxu0
    %v1330 = vadd.f32 %v997, %v1324
    %v1331 = vadd.f32 %v998, %v1327
    %1332 = vadd.xlane.f32.xlu0 %v1330
    %v1333 = vpop.xlane.xlu0 %1332
    %1334 = vadd.xlane.f32.xlu0 %v1331
    %v1335 = vpop.xlane.xlu0 %1334
    %v1336 = vmul.f32 %v1333, %v968
    %v1337 = vmul.f32 %v1335, %v968
    %v1338 = vsub.f32 %v1330, %v1336
    %v1339 = vsub.f32 %v1331, %v1337
    %v1340 = vmul.f32 %v1338, %v1338
    %v1341 = vmul.f32 %v1339, %v1339
    %1342 = vadd.xlane.f32.xlu0 %v1340
    %v1343 = vpop.xlane.xlu0 %1342
    %1344 = vadd.xlane.f32.xlu0 %v1341
    %v1345 = vpop.xlane.xlu0 %1344
    %v1346 = vmul.f32 %v1343, %v968
    %v1347 = vmul.f32 %v1345, %v968
    %v1348 = vadd.f32 %v1346, 1e-05
    %v1349 = vadd.f32 %v1347, 1e-05
    %v1350 = vrsqrt.pop %v1348
    %v1351 = vrsqrt.pop %v1349
    %v1352 = vmul.f32 %v1338, %v1350
    %v1353 = vmul.f32 %v1339, %v1351
    %v1354 = vlaneseq
    %v1355 = vshrl.u32 %v1354, 7
    %v1356 = vsub.s32 6, %v1355
    %v1357 = vrot.slane %v134, %v1356
    %v1358 = vmul.f32 %v1352, %v1357
    %v1359 = vmul.f32 %v1353, %v1357
    %v1360 = vlaneseq
    %v1361 = vshrl.u32 %v1360, 7
    %v1362 = vsub.s32 7, %v1361
    %v1363 = vrot.slane %v134, %v1362
    %v1364 = vadd.f32 %v1358, %v1363
    %v1365 = vadd.f32 %v1359, %v1363
    %v1366 = vlaneseq
    %v1367 = vshrl.u32 %v1366, 7
    %v1368 = vsub.s32 0, %v1367
    %v1369 = vrot.slane %v125, %v1368
    %1371 = vbcast.lane.b32.xlu0 %v1369, 256
    %v1372 = vpop.permute.xlu0 %1371
    %v1373 = vlaneseq
    %v1374 = vshrl.u32 %v1373, 7
    %v1375 = vsub.s32 1, %v1374
    %v1376 = vrot.slane %v125, %v1375
    %1378 = vbcast.lane.b32.xlu0 %v1376, 256
    %v1379 = vpop.permute.xlu0 %1378
    %v1380 = vmul.f32 %v1364, %v1372
    %v1381 = vmul.f32 %v1365, %v1379
    %v1382 = vrot.slane %v1380, 4
    %v1383 = vadd.f32 %v1380, %v1382
    %v1384 = vrot.slane %v1383, 2
    %v1385 = vadd.f32 %v1383, %v1384
    %v1386 = vrot.slane %v1385, 1
    %v1387 = vadd.f32 %v1385, %v1386
    %v1388 = vrot.slane %v1381, 4
    %v1389 = vadd.f32 %v1381, %v1388
    %v1390 = vrot.slane %v1389, 2
    %v1391 = vadd.f32 %v1389, %v1390
    %v1392 = vrot.slane %v1391, 1
    %v1393 = vadd.f32 %v1391, %v1392
    %v1394 = vmul.f32 %v1387, %v1387
    %v1395 = vmul.f32 %v1393, %v1393
    %vm1398 = vcmask 1041409
    %v1399 = vsel %vm1398, %v1395, %v1394
    %vm1401 = vcmask 1041408
    %v1402 = vsel %vm1401, %v1399, 0.0
    %1403 = vadd.xlane.f32.xlu0 %v1402
    %v1404 = vpop.xlane.xlu0 %1403
    %v1405 = vmax.f32 %v1404, 1e-24
    %v1406 = vrsqrt.pop %v1405
    %v1408 = vrot.slane %v1406, 1
    %v1411 = vmul.f32 %v1387, %v1406
    %v1412 = vmul.f32 %v1393, %v1408
    %v1415 = vrot.slane %v1412, 7
    %v1416 = vsel %vm1398, %v1415, %v1411
    %1418 = vst [vmem:[#allocation13] sm:$0x3] %v1416
    // Predicated region
    $region70: #{tpu_custom_call.1} parent=1 // pred_check
      _
    $region71: #{tpu_custom_call.1} parent=1 // pred_check_branch
      %1420 = sbr.rel (0) target = $region73
    $region72: #{tpu_custom_call.1} parent=1 // pred_region
      %s1422 = ssub.s32 32, 32
      %1423 = vsyncadd [#allocation4], %s1422
      %s1425 = sshll.u32 [#allocation13], 4
      %s1426 = int_to_ptr.vmem [resolvable:$true] %s1425
      %1428 = dma.vmem_to_hbm [thread:$0]  %s1426, 32, %s11, [#allocation4]
    $region73: #{tpu_custom_call.1} parent=1 // pred_fallthru
      _
    // Predicated region
    $region74: #{tpu_custom_call.1} parent=1 // pred_check
      _
    $region75: #{tpu_custom_call.1} parent=1 // pred_check_branch
      %1430 = sbr.rel (0) target = $region77
    $region76: #{tpu_custom_call.1} parent=1 // pred_region
      %1431 = dma.done [#allocation4], 32
    $region77: #{tpu_custom_call.1} parent=1 // pred_fallthru
      _
    %1432 = vsyncpa [#allocation3], 1
    %1433 = vsyncpa [#allocation6], 1
    %1434 = vsyncpa [#allocation9], 1
    %1435 = vsyncpa [#allocation12], 1
    %1436 = vsyncpa [#allocation4], 1

</llo_original>
